<compile_context>
chip_gen: v5e
topology: v5e:2x2
jax: 0.10.0
libtpu: 0.0.40
codegen_flags: <defaults>
</compile_context>

<pallas_src>
import functools

import jax
import jax.numpy as jnp
import numpy as np
from jax import lax
from jax.experimental import pallas as pl
from jax.experimental.pallas import tpu as pltpu


# ----------------------------------------------------------------------------
# Kernel: whole batch processed in one invocation; rows of e / H are laid out
# time-major:  row = t * B + b.
# ----------------------------------------------------------------------------
def _lstm_attn_kernel(e_ref, wih_f_ref, whh_f_ref, b_f_ref,
                      wih_b_ref, whh_b_ref, b_b_ref,
                      h0_ref, bias_ref, w_fc_ref, b_fc_ref,
                      y_ref, hcat_ref,
                      *, hidden, seq_len, batch):
    H, T, B = hidden, seq_len, batch
    f32 = jnp.float32

    e = e_ref[...]                                   # (T*B, E), time-major rows
    E = e.shape[-1]

    # ---- hoisted input projection: one batched MXU matmul per direction ----
    gx_f = jnp.dot(e, wih_f_ref[...], preferred_element_type=f32) + b_f_ref[...]
    gx_b = jnp.dot(e, wih_b_ref[...], preferred_element_type=f32) + b_b_ref[...]
    whh_f = whh_f_ref[...]
    whh_b = whh_b_ref[...]

    def cell(gates, c):
        # gates: (B, 4H). Two whole-vreg EUP calls, then static lane slices.
        sig = jax.nn.sigmoid(gates)
        th = jnp.tanh(gates)
        i_g = sig[:, 0 * H:1 * H]
        f_g = sig[:, 1 * H:2 * H]
        g_g = th[:, 2 * H:3 * H]
        o_g = sig[:, 3 * H:4 * H]
        c_new = f_g * c + i_g * g_g
        h_new = o_g * jnp.tanh(c_new)
        return h_new, c_new

    # ---- bidirectional recurrence, both directions interleaved -------------
    # Module semantics: BOTH h0 and c0 come from self.h0.
    h_f = c_f = h0_ref[0]                            # (B, H)
    h_b = c_b = h0_ref[1]                            # (B, H)
    for s in range(T):                               # static unroll (T is small)
        tb = T - 1 - s
        g_f = gx_f[s * B:(s + 1) * B, :] + jnp.dot(
            h_f, whh_f, preferred_element_type=f32)
        g_b = gx_b[tb * B:(tb + 1) * B, :] + jnp.dot(
            h_b, whh_b, preferred_element_type=f32)
        h_f, c_f = cell(g_f, c_f)
        h_b, c_b = cell(g_b, c_b)
        hcat_ref[s * B:(s + 1) * B, 0:H] = h_f
        hcat_ref[tb * B:(tb + 1) * B, H:2 * H] = h_b

    Hflat = hcat_ref[...]                            # (T*B, 2H)

    # ---- self-attention as one dense matmul + block-diagonal mask ----------
    scores = lax.dot_general(Hflat, Hflat, (((1,), (1,)), ((), ())),
                             preferred_element_type=f32)        # (T*B, T*B)
    scores = scores + bias_ref[...]                  # cross-batch pairs -> -1e30
    scores = scores - jnp.max(scores, axis=-1, keepdims=True)
    p = jnp.exp(scores)
    probs = p * pl.reciprocal(jnp.sum(p, axis=-1, keepdims=True), approx=True)
    attn = jnp.dot(probs, e, preferred_element_type=f32)        # (T*B, E)

    # ---- relu + max-pool over time (unrolled max over static row blocks) ---
    rh = jnp.maximum(Hflat, 0.0)
    ra = jnp.maximum(attn, 0.0)
    h_pooled = rh[0:B, :]
    a_pooled = ra[0:B, :]
    for t in range(1, T):
        h_pooled = jnp.maximum(h_pooled, rh[t * B:(t + 1) * B, :])
        a_pooled = jnp.maximum(a_pooled, ra[t * B:(t + 1) * B, :])

    # ---- final linear; concat fused away via two static w_fc slices --------
    y = (jnp.dot(h_pooled, w_fc_ref[0:2 * H, :], preferred_element_type=f32)
         + jnp.dot(a_pooled, w_fc_ref[2 * H:2 * H + E, :],
                   preferred_element_type=f32)
         + b_fc_ref[...])
    y_ref[...] = y.astype(y_ref.dtype)


# ----------------------------------------------------------------------------
# Wrapper: embedding gather + layout plumbing stay in XLA glue.
# ----------------------------------------------------------------------------
def lstm_self_attention(tokens, params, *, hidden, label_size):
    H = hidden
    L = label_size

    emb = params["embed"][tokens].astype(jnp.float32)        # (B, T, E) gather (glue)
    B, T, E = emb.shape
    TB = T * B
    Lp = pl.cdiv(L, 128) * 128                               # lane-dense output width

    # time-major flattening: row t*B + b  <->  (time t, batch b)
    e_flat = jnp.swapaxes(emb, 0, 1).reshape(TB, E)

    # additive attention mask: 0 for same-batch pairs, -1e30 across batches
    rb = jnp.arange(TB, dtype=jnp.int32) % B
    bias = jnp.where(rb[:, None] == rb[None, :], 0.0, -1e30).astype(jnp.float32)

    # learned initial state broadcast over the batch (module uses it for h0 AND c0)
    h0 = jnp.broadcast_to(params["h0"][:, None, :], (2, B, H)).astype(jnp.float32)

    # pad fc weight/bias so the output store is a full-128-lane unmasked store
    w_fc = jnp.zeros((2 * H + E, Lp), jnp.float32).at[:, :L].set(params["w_fc"])
    b_fc = jnp.zeros((1, Lp), jnp.float32).at[:, :L].set(params["b_fc"])

    kernel = functools.partial(_lstm_attn_kernel, hidden=H, seq_len=T, batch=B)

    def fixed(shape):
        return pl.BlockSpec(shape, lambda i, _n=len(shape): (0,) * _n)

    grid_spec = pltpu.PrefetchScalarGridSpec(
        num_scalar_prefetch=0,
        # Whole (small) batch handled in one invocation; for large B, tile the
        # batch on a parallel grid axis instead of iterating samples serially.
        grid=(1,),
        in_specs=[
            fixed((TB, E)),                                         # e_flat
            fixed((E, 4 * H)), fixed((H, 4 * H)), fixed((1, 4 * H)),  # fwd LSTM
            fixed((E, 4 * H)), fixed((H, 4 * H)), fixed((1, 4 * H)),  # bwd LSTM
            fixed((2, B, H)),                                       # h0 (= c0)
            fixed((TB, TB)),                                        # attention mask
            fixed((2 * H + E, Lp)), fixed((1, Lp)),                 # fc1
        ],
        out_specs=pl.BlockSpec((B, Lp), lambda i: (0, 0)),
        scratch_shapes=[pltpu.VMEM((TB, 2 * H), jnp.float32)],
    )

    y_pad = pl.pallas_call(
        kernel,
        out_shape=jax.ShapeDtypeStruct((B, Lp), jnp.float32),
        grid_spec=grid_spec,
        compiler_params=pltpu.CompilerParams(
            dimension_semantics=("parallel",)),
    )(e_flat,
      params["wih_f"], params["whh_f"], params["b_f"],
      params["wih_b"], params["whh_b"], params["b_b"],
      h0, bias, w_fc, b_fc)
    return y_pad[:, :L]


# ----------------------------------------------------------------------------
# Pure-JAX reference (same math, no Pallas) for a correctness sanity check.
# Matches the module: both h0 and c0 are initialized from the h0 parameter.
# ----------------------------------------------------------------------------
def reference(tokens, p, *, hidden):
    emb = p["embed"][tokens]
    H = hidden

    def one(e):  # e: (T, E)
        def run_dir(wih, whh, b, h0, reverse):
            xs = e[::-1] if reverse else e

            def step(carry, x):
                h, c = carry
                gates = x @ wih + h @ whh + b[0]
                i_g = jax.nn.sigmoid(gates[0 * H:1 * H])
                f_g = jax.nn.sigmoid(gates[1 * H:2 * H])
                g_g = jnp.tanh(gates[2 * H:3 * H])
                o_g = jax.nn.sigmoid(gates[3 * H:4 * H])
                c = f_g * c + i_g * g_g
                h = o_g * jnp.tanh(c)
                return (h, c), h

            (_, _), hs = lax.scan(step, (h0, h0), xs)   # module: c0 := h0
            return hs[::-1] if reverse else hs

        Hf = run_dir(p["wih_f"], p["whh_f"], p["b_f"], p["h0"][0], False)
        Hb = run_dir(p["wih_b"], p["whh_b"], p["b_b"], p["h0"][1], True)
        Hm = jnp.concatenate([Hf, Hb], axis=1)
        probs = jax.nn.softmax(Hm @ Hm.T, axis=1)
        aw = probs @ e
        h_pooled = jnp.max(jax.nn.relu(Hm), axis=0)
        a_pooled = jnp.max(jax.nn.relu(aw), axis=0)
        d = jnp.concatenate([h_pooled, a_pooled])
        return d @ p["w_fc"] + p["b_fc"][0]

    return jax.vmap(one)(emb)


# ----------------------------------------------------------------------------
# Deterministic parameter construction + run
# ----------------------------------------------------------------------------
def make_params(key, *, vocab, embed_dim, hidden, label_size):
    H, E, L = hidden, embed_dim, label_size
    ks = jax.random.split(key, 12)
    k_std = 1.0 / np.sqrt(H)

    def u(k, shape):
        return jax.random.uniform(k, shape, jnp.float32, -k_std, k_std)

    params = {
        "embed": jax.random.normal(ks[0], (vocab, E), jnp.float32) * 0.1,
        # forward direction (PyTorch gate order i, f, g, o), pre-transposed to (in, 4H)
        "wih_f": u(ks[1], (4 * H, E)).T,
        "whh_f": u(ks[2], (4 * H, H)).T,
        "b_f": (u(ks[3], (4 * H,)) + u(ks[4], (4 * H,))).reshape(1, 4 * H),
        # backward direction
        "wih_b": u(ks[5], (4 * H, E)).T,
        "whh_b": u(ks[6], (4 * H, H)).T,
        "b_b": (u(ks[7], (4 * H,)) + u(ks[8], (4 * H,))).reshape(1, 4 * H),
        # learned initial state (nonzero so the h0/c0 path is actually tested)
        "h0": 0.1 * jax.random.normal(ks[11], (2, H), jnp.float32),
        # fc1: Linear(2H + E, L), pre-transposed
        "w_fc": u(ks[9], (L, 2 * H + E)).T,
        "b_fc": u(ks[10], (L,)).reshape(1, L),
    }
    return {k: jnp.asarray(v, jnp.float32) for k, v in params.items()}


if __name__ == "__main__":
    VOCAB, EMBED, HIDDEN, LABEL = 50, 32, 32, 4
    B, T = 2, 8

    key = jax.random.PRNGKey(0)
    k_tok, k_par = jax.random.split(key)
    tokens = jax.random.randint(k_tok, (B, T), 0, VOCAB, dtype=jnp.int32)
    params = make_params(k_par, vocab=VOCAB, embed_dim=EMBED,
                         hidden=HIDDEN, label_size=LABEL)

    y = lstm_self_attention(tokens, params, hidden=HIDDEN, label_size=LABEL)
    y = jax.block_until_ready(y)

    y_ref = jax.block_until_ready(reference(tokens, params, hidden=HIDDEN))
    np.testing.assert_allclose(np.asarray(y), np.asarray(y_ref),
                               rtol=1e-2, atol=1e-2)

    print("KERNEL_OK")
</pallas_src>

<mosaic_0001>
module attributes {stable_mosaic.version = 11 : i64} {
  func.func @_lstm_attn_kernel(%arg0: i32, %arg1: memref<16x32xf32, #tpu.memory_space<vmem>>, %arg2: memref<32x128xf32, #tpu.memory_space<vmem>>, %arg3: memref<32x128xf32, #tpu.memory_space<vmem>>, %arg4: memref<1x128xf32, #tpu.memory_space<vmem>>, %arg5: memref<32x128xf32, #tpu.memory_space<vmem>>, %arg6: memref<32x128xf32, #tpu.memory_space<vmem>>, %arg7: memref<1x128xf32, #tpu.memory_space<vmem>>, %arg8: memref<2x2x32xf32, #tpu.memory_space<vmem>>, %arg9: memref<16x16xf32, #tpu.memory_space<vmem>>, %arg10: memref<96x128xf32, #tpu.memory_space<vmem>>, %arg11: memref<1x128xf32, #tpu.memory_space<vmem>>, %arg12: memref<2x128xf32, #tpu.memory_space<vmem>>, %arg13: memref<16x64xf32, #tpu.memory_space<vmem>>) attributes {dimension_semantics = [#tpu.dimension_semantics<parallel>], iteration_bounds = array<i64: 1>, scalar_prefetch = 0 : i64, scratch_operands = 1 : i64, tpu.core_type = #tpu.core_type<tc>, window_params = [{pipeline_mode = #tpu.pipeline_mode<synchronous>, transform_indices = @transform_0, window_bounds = array<i64: 16, 32>}, {pipeline_mode = #tpu.pipeline_mode<synchronous>, transform_indices = @transform_1, window_bounds = array<i64: 32, 128>}, {pipeline_mode = #tpu.pipeline_mode<synchronous>, transform_indices = @transform_2, window_bounds = array<i64: 32, 128>}, {pipeline_mode = #tpu.pipeline_mode<synchronous>, transform_indices = @transform_3, window_bounds = array<i64: 1, 128>}, {pipeline_mode = #tpu.pipeline_mode<synchronous>, transform_indices = @transform_4, window_bounds = array<i64: 32, 128>}, {pipeline_mode = #tpu.pipeline_mode<synchronous>, transform_indices = @transform_5, window_bounds = array<i64: 32, 128>}, {pipeline_mode = #tpu.pipeline_mode<synchronous>, transform_indices = @transform_6, window_bounds = array<i64: 1, 128>}, {pipeline_mode = #tpu.pipeline_mode<synchronous>, transform_indices = @transform_7, window_bounds = array<i64: 2, 2, 32>}, {pipeline_mode = #tpu.pipeline_mode<synchronous>, transform_indices = @transform_8, window_bounds = array<i64: 16, 16>}, {pipeline_mode = #tpu.pipeline_mode<synchronous>, transform_indices = @transform_9, window_bounds = array<i64: 96, 128>}, {pipeline_mode = #tpu.pipeline_mode<synchronous>, transform_indices = @transform_10, window_bounds = array<i64: 1, 128>}, {pipeline_mode = #tpu.pipeline_mode<synchronous>, transform_indices = @transform_11, window_bounds = array<i64: 2, 128>}]} {
    %c0 = arith.constant 0 : index
    %c0_0 = arith.constant 0 : index
    %0 = vector.load %arg1[%c0, %c0_0] : memref<16x32xf32, #tpu.memory_space<vmem>>, vector<16x32xf32>
    %c0_1 = arith.constant 0 : index
    %c0_2 = arith.constant 0 : index
    %1 = vector.load %arg2[%c0_1, %c0_2] : memref<32x128xf32, #tpu.memory_space<vmem>>, vector<32x128xf32>
    %cst = arith.constant dense<0.000000e+00> : vector<16x128xf32>
    %2 = tpu.matmul %0, %1, %cst {dimension_numbers = #tpu.dot_dimension_numbers<[1], [0], [0], [1], [0, 0, 1, 1], [], []>} : vector<16x32xf32>, vector<32x128xf32>, vector<16x128xf32> -> vector<16x128xf32>
    %c0_3 = arith.constant 0 : index
    %c0_4 = arith.constant 0 : index
    %3 = vector.load %arg4[%c0_3, %c0_4] : memref<1x128xf32, #tpu.memory_space<vmem>>, vector<1x128xf32>
    %4 = vector.broadcast %3 : vector<1x128xf32> to vector<16x128xf32>
    %5 = arith.addf %2, %4 : vector<16x128xf32>
    %c0_5 = arith.constant 0 : index
    %c0_6 = arith.constant 0 : index
    %6 = vector.load %arg5[%c0_5, %c0_6] : memref<32x128xf32, #tpu.memory_space<vmem>>, vector<32x128xf32>
    %cst_7 = arith.constant dense<0.000000e+00> : vector<16x128xf32>
    %7 = tpu.matmul %0, %6, %cst_7 {dimension_numbers = #tpu.dot_dimension_numbers<[1], [0], [0], [1], [0, 0, 1, 1], [], []>} : vector<16x32xf32>, vector<32x128xf32>, vector<16x128xf32> -> vector<16x128xf32>
    %c0_8 = arith.constant 0 : index
    %c0_9 = arith.constant 0 : index
    %8 = vector.load %arg7[%c0_8, %c0_9] : memref<1x128xf32, #tpu.memory_space<vmem>>, vector<1x128xf32>
    %9 = vector.broadcast %8 : vector<1x128xf32> to vector<16x128xf32>
    %10 = arith.addf %7, %9 : vector<16x128xf32>
    %c0_10 = arith.constant 0 : index
    %c0_11 = arith.constant 0 : index
    %11 = vector.load %arg3[%c0_10, %c0_11] : memref<32x128xf32, #tpu.memory_space<vmem>>, vector<32x128xf32>
    %c0_12 = arith.constant 0 : index
    %c0_13 = arith.constant 0 : index
    %12 = vector.load %arg6[%c0_12, %c0_13] : memref<32x128xf32, #tpu.memory_space<vmem>>, vector<32x128xf32>
    %c0_14 = arith.constant 0 : index
    %c0_15 = arith.constant 0 : index
    %c0_16 = arith.constant 0 : index
    %13 = vector.load %arg8[%c0_14, %c0_15, %c0_16] : memref<2x2x32xf32, #tpu.memory_space<vmem>>, vector<1x2x32xf32>
    %14 = vector.shape_cast %13 : vector<1x2x32xf32> to vector<2x32xf32>
    %c1 = arith.constant 1 : index
    %c0_17 = arith.constant 0 : index
    %c0_18 = arith.constant 0 : index
    %15 = vector.load %arg8[%c1, %c0_17, %c0_18] : memref<2x2x32xf32, #tpu.memory_space<vmem>>, vector<1x2x32xf32>
    %16 = vector.shape_cast %15 : vector<1x2x32xf32> to vector<2x32xf32>
    %17 = vector.extract_strided_slice %5 {offsets = [0, 0], sizes = [2, 128], strides = [1, 1]} : vector<16x128xf32> to vector<2x128xf32>
    %cst_19 = arith.constant dense<0.000000e+00> : vector<2x128xf32>
    %18 = tpu.matmul %14, %11, %cst_19 {dimension_numbers = #tpu.dot_dimension_numbers<[1], [0], [0], [1], [0, 0, 1, 1], [], []>} : vector<2x32xf32>, vector<32x128xf32>, vector<2x128xf32> -> vector<2x128xf32>
    %19 = arith.addf %17, %18 : vector<2x128xf32>
    %20 = vector.extract_strided_slice %10 {offsets = [14, 0], sizes = [2, 128], strides = [1, 1]} : vector<16x128xf32> to vector<2x128xf32>
    %cst_20 = arith.constant dense<0.000000e+00> : vector<2x128xf32>
    %21 = tpu.matmul %16, %12, %cst_20 {dimension_numbers = #tpu.dot_dimension_numbers<[1], [0], [0], [1], [0, 0, 1, 1], [], []>} : vector<2x32xf32>, vector<32x128xf32>, vector<2x128xf32> -> vector<2x128xf32>
    %22 = arith.addf %20, %21 : vector<2x128xf32>
    %23 = arith.negf %19 : vector<2x128xf32>
    %24 = math.exp %23 : vector<2x128xf32>
    %cst_21 = arith.constant 1.000000e+00 : f32
    %25 = vector.broadcast %cst_21 : f32 to vector<2x128xf32>
    %26 = arith.addf %25, %24 : vector<2x128xf32>
    %27 = arith.divf %25, %26 : vector<2x128xf32>
    %28 = math.tanh %19 : vector<2x128xf32>
    %29 = vector.extract_strided_slice %27 {offsets = [0, 0], sizes = [2, 32], strides = [1, 1]} : vector<2x128xf32> to vector<2x32xf32>
    %30 = vector.extract_strided_slice %27 {offsets = [0, 32], sizes = [2, 32], strides = [1, 1]} : vector<2x128xf32> to vector<2x32xf32>
    %31 = vector.extract_strided_slice %28 {offsets = [0, 64], sizes = [2, 32], strides = [1, 1]} : vector<2x128xf32> to vector<2x32xf32>
    %32 = vector.extract_strided_slice %27 {offsets = [0, 96], sizes = [2, 32], strides = [1, 1]} : vector<2x128xf32> to vector<2x32xf32>
    %33 = arith.mulf %30, %14 : vector<2x32xf32>
    %34 = arith.mulf %29, %31 : vector<2x32xf32>
    %35 = arith.addf %33, %34 : vector<2x32xf32>
    %36 = math.tanh %35 : vector<2x32xf32>
    %37 = arith.mulf %32, %36 : vector<2x32xf32>
    %38 = arith.negf %22 : vector<2x128xf32>
    %39 = math.exp %38 : vector<2x128xf32>
    %cst_22 = arith.constant 1.000000e+00 : f32
    %40 = vector.broadcast %cst_22 : f32 to vector<2x128xf32>
    %41 = arith.addf %40, %39 : vector<2x128xf32>
    %42 = arith.divf %40, %41 : vector<2x128xf32>
    %43 = math.tanh %22 : vector<2x128xf32>
    %44 = vector.extract_strided_slice %42 {offsets = [0, 0], sizes = [2, 32], strides = [1, 1]} : vector<2x128xf32> to vector<2x32xf32>
    %45 = vector.extract_strided_slice %42 {offsets = [0, 32], sizes = [2, 32], strides = [1, 1]} : vector<2x128xf32> to vector<2x32xf32>
    %46 = vector.extract_strided_slice %43 {offsets = [0, 64], sizes = [2, 32], strides = [1, 1]} : vector<2x128xf32> to vector<2x32xf32>
    %47 = vector.extract_strided_slice %42 {offsets = [0, 96], sizes = [2, 32], strides = [1, 1]} : vector<2x128xf32> to vector<2x32xf32>
    %48 = arith.mulf %45, %16 : vector<2x32xf32>
    %49 = arith.mulf %44, %46 : vector<2x32xf32>
    %50 = arith.addf %48, %49 : vector<2x32xf32>
    %51 = math.tanh %50 : vector<2x32xf32>
    %52 = arith.mulf %47, %51 : vector<2x32xf32>
    %c0_23 = arith.constant 0 : index
    %c0_24 = arith.constant 0 : index
    %53 = vector.load %arg13[%c0_23, %c0_24] : memref<16x64xf32, #tpu.memory_space<vmem>>, vector<2x32xf32>
    tpu.vector_store %arg13[%c0_23, %c0_24], %37 {strides = array<i32>} : memref<16x64xf32, #tpu.memory_space<vmem>>, vector<2x32xf32>,
    %c14 = arith.constant 14 : index
    %c32 = arith.constant 32 : index
    %54 = vector.load %arg13[%c14, %c32] : memref<16x64xf32, #tpu.memory_space<vmem>>, vector<2x32xf32>
    tpu.vector_store %arg13[%c14, %c32], %52 {strides = array<i32>} : memref<16x64xf32, #tpu.memory_space<vmem>>, vector<2x32xf32>,
    %55 = vector.extract_strided_slice %5 {offsets = [2, 0], sizes = [2, 128], strides = [1, 1]} : vector<16x128xf32> to vector<2x128xf32>
    %cst_25 = arith.constant dense<0.000000e+00> : vector<2x128xf32>
    %56 = tpu.matmul %37, %11, %cst_25 {dimension_numbers = #tpu.dot_dimension_numbers<[1], [0], [0], [1], [0, 0, 1, 1], [], []>} : vector<2x32xf32>, vector<32x128xf32>, vector<2x128xf32> -> vector<2x128xf32>
    %57 = arith.addf %55, %56 : vector<2x128xf32>
    %58 = vector.extract_strided_slice %10 {offsets = [12, 0], sizes = [2, 128], strides = [1, 1]} : vector<16x128xf32> to vector<2x128xf32>
    %cst_26 = arith.constant dense<0.000000e+00> : vector<2x128xf32>
    %59 = tpu.matmul %52, %12, %cst_26 {dimension_numbers = #tpu.dot_dimension_numbers<[1], [0], [0], [1], [0, 0, 1, 1], [], []>} : vector<2x32xf32>, vector<32x128xf32>, vector<2x128xf32> -> vector<2x128xf32>
    %60 = arith.addf %58, %59 : vector<2x128xf32>
    %61 = arith.negf %57 : vector<2x128xf32>
    %62 = math.exp %61 : vector<2x128xf32>
    %cst_27 = arith.constant 1.000000e+00 : f32
    %63 = vector.broadcast %cst_27 : f32 to vector<2x128xf32>
    %64 = arith.addf %63, %62 : vector<2x128xf32>
    %65 = arith.divf %63, %64 : vector<2x128xf32>
    %66 = math.tanh %57 : vector<2x128xf32>
    %67 = vector.extract_strided_slice %65 {offsets = [0, 0], sizes = [2, 32], strides = [1, 1]} : vector<2x128xf32> to vector<2x32xf32>
    %68 = vector.extract_strided_slice %65 {offsets = [0, 32], sizes = [2, 32], strides = [1, 1]} : vector<2x128xf32> to vector<2x32xf32>
    %69 = vector.extract_strided_slice %66 {offsets = [0, 64], sizes = [2, 32], strides = [1, 1]} : vector<2x128xf32> to vector<2x32xf32>
    %70 = vector.extract_strided_slice %65 {offsets = [0, 96], sizes = [2, 32], strides = [1, 1]} : vector<2x128xf32> to vector<2x32xf32>
    %71 = arith.mulf %68, %35 : vector<2x32xf32>
    %72 = arith.mulf %67, %69 : vector<2x32xf32>
    %73 = arith.addf %71, %72 : vector<2x32xf32>
    %74 = math.tanh %73 : vector<2x32xf32>
    %75 = arith.mulf %70, %74 : vector<2x32xf32>
    %76 = arith.negf %60 : vector<2x128xf32>
    %77 = math.exp %76 : vector<2x128xf32>
    %cst_28 = arith.constant 1.000000e+00 : f32
    %78 = vector.broadcast %cst_28 : f32 to vector<2x128xf32>
    %79 = arith.addf %78, %77 : vector<2x128xf32>
    %80 = arith.divf %78, %79 : vector<2x128xf32>
    %81 = math.tanh %60 : vector<2x128xf32>
    %82 = vector.extract_strided_slice %80 {offsets = [0, 0], sizes = [2, 32], strides = [1, 1]} : vector<2x128xf32> to vector<2x32xf32>
    %83 = vector.extract_strided_slice %80 {offsets = [0, 32], sizes = [2, 32], strides = [1, 1]} : vector<2x128xf32> to vector<2x32xf32>
    %84 = vector.extract_strided_slice %81 {offsets = [0, 64], sizes = [2, 32], strides = [1, 1]} : vector<2x128xf32> to vector<2x32xf32>
    %85 = vector.extract_strided_slice %80 {offsets = [0, 96], sizes = [2, 32], strides = [1, 1]} : vector<2x128xf32> to vector<2x32xf32>
    %86 = arith.mulf %83, %50 : vector<2x32xf32>
    %87 = arith.mulf %82, %84 : vector<2x32xf32>
    %88 = arith.addf %86, %87 : vector<2x32xf32>
    %89 = math.tanh %88 : vector<2x32xf32>
    %90 = arith.mulf %85, %89 : vector<2x32xf32>
    %c2 = arith.constant 2 : index
    %c0_29 = arith.constant 0 : index
    %91 = vector.load %arg13[%c2, %c0_29] : memref<16x64xf32, #tpu.memory_space<vmem>>, vector<2x32xf32>
    tpu.vector_store %arg13[%c2, %c0_29], %75 {strides = array<i32>} : memref<16x64xf32, #tpu.memory_space<vmem>>, vector<2x32xf32>,
    %c12 = arith.constant 12 : index
    %c32_30 = arith.constant 32 : index
    %92 = vector.load %arg13[%c12, %c32_30] : memref<16x64xf32, #tpu.memory_space<vmem>>, vector<2x32xf32>
    tpu.vector_store %arg13[%c12, %c32_30], %90 {strides = array<i32>} : memref<16x64xf32, #tpu.memory_space<vmem>>, vector<2x32xf32>,
    %93 = vector.extract_strided_slice %5 {offsets = [4, 0], sizes = [2, 128], strides = [1, 1]} : vector<16x128xf32> to vector<2x128xf32>
    %cst_31 = arith.constant dense<0.000000e+00> : vector<2x128xf32>
    %94 = tpu.matmul %75, %11, %cst_31 {dimension_numbers = #tpu.dot_dimension_numbers<[1], [0], [0], [1], [0, 0, 1, 1], [], []>} : vector<2x32xf32>, vector<32x128xf32>, vector<2x128xf32> -> vector<2x128xf32>
    %95 = arith.addf %93, %94 : vector<2x128xf32>
    %96 = vector.extract_strided_slice %10 {offsets = [10, 0], sizes = [2, 128], strides = [1, 1]} : vector<16x128xf32> to vector<2x128xf32>
    %cst_32 = arith.constant dense<0.000000e+00> : vector<2x128xf32>
    %97 = tpu.matmul %90, %12, %cst_32 {dimension_numbers = #tpu.dot_dimension_numbers<[1], [0], [0], [1], [0, 0, 1, 1], [], []>} : vector<2x32xf32>, vector<32x128xf32>, vector<2x128xf32> -> vector<2x128xf32>
    %98 = arith.addf %96, %97 : vector<2x128xf32>
    %99 = arith.negf %95 : vector<2x128xf32>
    %100 = math.exp %99 : vector<2x128xf32>
    %cst_33 = arith.constant 1.000000e+00 : f32
    %101 = vector.broadcast %cst_33 : f32 to vector<2x128xf32>
    %102 = arith.addf %101, %100 : vector<2x128xf32>
    %103 = arith.divf %101, %102 : vector<2x128xf32>
    %104 = math.tanh %95 : vector<2x128xf32>
    %105 = vector.extract_strided_slice %103 {offsets = [0, 0], sizes = [2, 32], strides = [1, 1]} : vector<2x128xf32> to vector<2x32xf32>
    %106 = vector.extract_strided_slice %103 {offsets = [0, 32], sizes = [2, 32], strides = [1, 1]} : vector<2x128xf32> to vector<2x32xf32>
    %107 = vector.extract_strided_slice %104 {offsets = [0, 64], sizes = [2, 32], strides = [1, 1]} : vector<2x128xf32> to vector<2x32xf32>
    %108 = vector.extract_strided_slice %103 {offsets = [0, 96], sizes = [2, 32], strides = [1, 1]} : vector<2x128xf32> to vector<2x32xf32>
    %109 = arith.mulf %106, %73 : vector<2x32xf32>
    %110 = arith.mulf %105, %107 : vector<2x32xf32>
    %111 = arith.addf %109, %110 : vector<2x32xf32>
    %112 = math.tanh %111 : vector<2x32xf32>
    %113 = arith.mulf %108, %112 : vector<2x32xf32>
    %114 = arith.negf %98 : vector<2x128xf32>
    %115 = math.exp %114 : vector<2x128xf32>
    %cst_34 = arith.constant 1.000000e+00 : f32
    %116 = vector.broadcast %cst_34 : f32 to vector<2x128xf32>
    %117 = arith.addf %116, %115 : vector<2x128xf32>
    %118 = arith.divf %116, %117 : vector<2x128xf32>
    %119 = math.tanh %98 : vector<2x128xf32>
    %120 = vector.extract_strided_slice %118 {offsets = [0, 0], sizes = [2, 32], strides = [1, 1]} : vector<2x128xf32> to vector<2x32xf32>
    %121 = vector.extract_strided_slice %118 {offsets = [0, 32], sizes = [2, 32], strides = [1, 1]} : vector<2x128xf32> to vector<2x32xf32>
    %122 = vector.extract_strided_slice %119 {offsets = [0, 64], sizes = [2, 32], strides = [1, 1]} : vector<2x128xf32> to vector<2x32xf32>
    %123 = vector.extract_strided_slice %118 {offsets = [0, 96], sizes = [2, 32], strides = [1, 1]} : vector<2x128xf32> to vector<2x32xf32>
    %124 = arith.mulf %121, %88 : vector<2x32xf32>
    %125 = arith.mulf %120, %122 : vector<2x32xf32>
    %126 = arith.addf %124, %125 : vector<2x32xf32>
    %127 = math.tanh %126 : vector<2x32xf32>
    %128 = arith.mulf %123, %127 : vector<2x32xf32>
    %c4 = arith.constant 4 : index
    %c0_35 = arith.constant 0 : index
    %129 = vector.load %arg13[%c4, %c0_35] : memref<16x64xf32, #tpu.memory_space<vmem>>, vector<2x32xf32>
    tpu.vector_store %arg13[%c4, %c0_35], %113 {strides = array<i32>} : memref<16x64xf32, #tpu.memory_space<vmem>>, vector<2x32xf32>,
    %c10 = arith.constant 10 : index
    %c32_36 = arith.constant 32 : index
    %130 = vector.load %arg13[%c10, %c32_36] : memref<16x64xf32, #tpu.memory_space<vmem>>, vector<2x32xf32>
    tpu.vector_store %arg13[%c10, %c32_36], %128 {strides = array<i32>} : memref<16x64xf32, #tpu.memory_space<vmem>>, vector<2x32xf32>,
    %131 = vector.extract_strided_slice %5 {offsets = [6, 0], sizes = [2, 128], strides = [1, 1]} : vector<16x128xf32> to vector<2x128xf32>
    %cst_37 = arith.constant dense<0.000000e+00> : vector<2x128xf32>
    %132 = tpu.matmul %113, %11, %cst_37 {dimension_numbers = #tpu.dot_dimension_numbers<[1], [0], [0], [1], [0, 0, 1, 1], [], []>} : vector<2x32xf32>, vector<32x128xf32>, vector<2x128xf32> -> vector<2x128xf32>
    %133 = arith.addf %131, %132 : vector<2x128xf32>
    %134 = vector.extract_strided_slice %10 {offsets = [8, 0], sizes = [2, 128], strides = [1, 1]} : vector<16x128xf32> to vector<2x128xf32>
    %cst_38 = arith.constant dense<0.000000e+00> : vector<2x128xf32>
    %135 = tpu.matmul %128, %12, %cst_38 {dimension_numbers = #tpu.dot_dimension_numbers<[1], [0], [0], [1], [0, 0, 1, 1], [], []>} : vector<2x32xf32>, vector<32x128xf32>, vector<2x128xf32> -> vector<2x128xf32>
    %136 = arith.addf %134, %135 : vector<2x128xf32>
    %137 = arith.negf %133 : vector<2x128xf32>
    %138 = math.exp %137 : vector<2x128xf32>
    %cst_39 = arith.constant 1.000000e+00 : f32
    %139 = vector.broadcast %cst_39 : f32 to vector<2x128xf32>
    %140 = arith.addf %139, %138 : vector<2x128xf32>
    %141 = arith.divf %139, %140 : vector<2x128xf32>
    %142 = math.tanh %133 : vector<2x128xf32>
    %143 = vector.extract_strided_slice %141 {offsets = [0, 0], sizes = [2, 32], strides = [1, 1]} : vector<2x128xf32> to vector<2x32xf32>
    %144 = vector.extract_strided_slice %141 {offsets = [0, 32], sizes = [2, 32], strides = [1, 1]} : vector<2x128xf32> to vector<2x32xf32>
    %145 = vector.extract_strided_slice %142 {offsets = [0, 64], sizes = [2, 32], strides = [1, 1]} : vector<2x128xf32> to vector<2x32xf32>
    %146 = vector.extract_strided_slice %141 {offsets = [0, 96], sizes = [2, 32], strides = [1, 1]} : vector<2x128xf32> to vector<2x32xf32>
    %147 = arith.mulf %144, %111 : vector<2x32xf32>
    %148 = arith.mulf %143, %145 : vector<2x32xf32>
    %149 = arith.addf %147, %148 : vector<2x32xf32>
    %150 = math.tanh %149 : vector<2x32xf32>
    %151 = arith.mulf %146, %150 : vector<2x32xf32>
    %152 = arith.negf %136 : vector<2x128xf32>
    %153 = math.exp %152 : vector<2x128xf32>
    %cst_40 = arith.constant 1.000000e+00 : f32
    %154 = vector.broadcast %cst_40 : f32 to vector<2x128xf32>
    %155 = arith.addf %154, %153 : vector<2x128xf32>
    %156 = arith.divf %154, %155 : vector<2x128xf32>
    %157 = math.tanh %136 : vector<2x128xf32>
    %158 = vector.extract_strided_slice %156 {offsets = [0, 0], sizes = [2, 32], strides = [1, 1]} : vector<2x128xf32> to vector<2x32xf32>
    %159 = vector.extract_strided_slice %156 {offsets = [0, 32], sizes = [2, 32], strides = [1, 1]} : vector<2x128xf32> to vector<2x32xf32>
    %160 = vector.extract_strided_slice %157 {offsets = [0, 64], sizes = [2, 32], strides = [1, 1]} : vector<2x128xf32> to vector<2x32xf32>
    %161 = vector.extract_strided_slice %156 {offsets = [0, 96], sizes = [2, 32], strides = [1, 1]} : vector<2x128xf32> to vector<2x32xf32>
    %162 = arith.mulf %159, %126 : vector<2x32xf32>
    %163 = arith.mulf %158, %160 : vector<2x32xf32>
    %164 = arith.addf %162, %163 : vector<2x32xf32>
    %165 = math.tanh %164 : vector<2x32xf32>
    %166 = arith.mulf %161, %165 : vector<2x32xf32>
    %c6 = arith.constant 6 : index
    %c0_41 = arith.constant 0 : index
    %167 = vector.load %arg13[%c6, %c0_41] : memref<16x64xf32, #tpu.memory_space<vmem>>, vector<2x32xf32>
    tpu.vector_store %arg13[%c6, %c0_41], %151 {strides = array<i32>} : memref<16x64xf32, #tpu.memory_space<vmem>>, vector<2x32xf32>,
    %c8 = arith.constant 8 : index
    %c32_42 = arith.constant 32 : index
    %168 = vector.load %arg13[%c8, %c32_42] : memref<16x64xf32, #tpu.memory_space<vmem>>, vector<2x32xf32>
    tpu.vector_store %arg13[%c8, %c32_42], %166 {strides = array<i32>} : memref<16x64xf32, #tpu.memory_space<vmem>>, vector<2x32xf32>,
    %169 = vector.extract_strided_slice %5 {offsets = [8, 0], sizes = [2, 128], strides = [1, 1]} : vector<16x128xf32> to vector<2x128xf32>
    %cst_43 = arith.constant dense<0.000000e+00> : vector<2x128xf32>
    %170 = tpu.matmul %151, %11, %cst_43 {dimension_numbers = #tpu.dot_dimension_numbers<[1], [0], [0], [1], [0, 0, 1, 1], [], []>} : vector<2x32xf32>, vector<32x128xf32>, vector<2x128xf32> -> vector<2x128xf32>
    %171 = arith.addf %169, %170 : vector<2x128xf32>
    %172 = vector.extract_strided_slice %10 {offsets = [6, 0], sizes = [2, 128], strides = [1, 1]} : vector<16x128xf32> to vector<2x128xf32>
    %cst_44 = arith.constant dense<0.000000e+00> : vector<2x128xf32>
    %173 = tpu.matmul %166, %12, %cst_44 {dimension_numbers = #tpu.dot_dimension_numbers<[1], [0], [0], [1], [0, 0, 1, 1], [], []>} : vector<2x32xf32>, vector<32x128xf32>, vector<2x128xf32> -> vector<2x128xf32>
    %174 = arith.addf %172, %173 : vector<2x128xf32>
    %175 = arith.negf %171 : vector<2x128xf32>
    %176 = math.exp %175 : vector<2x128xf32>
    %cst_45 = arith.constant 1.000000e+00 : f32
    %177 = vector.broadcast %cst_45 : f32 to vector<2x128xf32>
    %178 = arith.addf %177, %176 : vector<2x128xf32>
    %179 = arith.divf %177, %178 : vector<2x128xf32>
    %180 = math.tanh %171 : vector<2x128xf32>
    %181 = vector.extract_strided_slice %179 {offsets = [0, 0], sizes = [2, 32], strides = [1, 1]} : vector<2x128xf32> to vector<2x32xf32>
    %182 = vector.extract_strided_slice %179 {offsets = [0, 32], sizes = [2, 32], strides = [1, 1]} : vector<2x128xf32> to vector<2x32xf32>
    %183 = vector.extract_strided_slice %180 {offsets = [0, 64], sizes = [2, 32], strides = [1, 1]} : vector<2x128xf32> to vector<2x32xf32>
    %184 = vector.extract_strided_slice %179 {offsets = [0, 96], sizes = [2, 32], strides = [1, 1]} : vector<2x128xf32> to vector<2x32xf32>
    %185 = arith.mulf %182, %149 : vector<2x32xf32>
    %186 = arith.mulf %181, %183 : vector<2x32xf32>
    %187 = arith.addf %185, %186 : vector<2x32xf32>
    %188 = math.tanh %187 : vector<2x32xf32>
    %189 = arith.mulf %184, %188 : vector<2x32xf32>
    %190 = arith.negf %174 : vector<2x128xf32>
    %191 = math.exp %190 : vector<2x128xf32>
    %cst_46 = arith.constant 1.000000e+00 : f32
    %192 = vector.broadcast %cst_46 : f32 to vector<2x128xf32>
    %193 = arith.addf %192, %191 : vector<2x128xf32>
    %194 = arith.divf %192, %193 : vector<2x128xf32>
    %195 = math.tanh %174 : vector<2x128xf32>
    %196 = vector.extract_strided_slice %194 {offsets = [0, 0], sizes = [2, 32], strides = [1, 1]} : vector<2x128xf32> to vector<2x32xf32>
    %197 = vector.extract_strided_slice %194 {offsets = [0, 32], sizes = [2, 32], strides = [1, 1]} : vector<2x128xf32> to vector<2x32xf32>
    %198 = vector.extract_strided_slice %195 {offsets = [0, 64], sizes = [2, 32], strides = [1, 1]} : vector<2x128xf32> to vector<2x32xf32>
    %199 = vector.extract_strided_slice %194 {offsets = [0, 96], sizes = [2, 32], strides = [1, 1]} : vector<2x128xf32> to vector<2x32xf32>
    %200 = arith.mulf %197, %164 : vector<2x32xf32>
    %201 = arith.mulf %196, %198 : vector<2x32xf32>
    %202 = arith.addf %200, %201 : vector<2x32xf32>
    %203 = math.tanh %202 : vector<2x32xf32>
    %204 = arith.mulf %199, %203 : vector<2x32xf32>
    %c8_47 = arith.constant 8 : index
    %c0_48 = arith.constant 0 : index
    %205 = vector.load %arg13[%c8_47, %c0_48] : memref<16x64xf32, #tpu.memory_space<vmem>>, vector<2x32xf32>
    tpu.vector_store %arg13[%c8_47, %c0_48], %189 {strides = array<i32>} : memref<16x64xf32, #tpu.memory_space<vmem>>, vector<2x32xf32>,
    %c6_49 = arith.constant 6 : index
    %c32_50 = arith.constant 32 : index
    %206 = vector.load %arg13[%c6_49, %c32_50] : memref<16x64xf32, #tpu.memory_space<vmem>>, vector<2x32xf32>
    tpu.vector_store %arg13[%c6_49, %c32_50], %204 {strides = array<i32>} : memref<16x64xf32, #tpu.memory_space<vmem>>, vector<2x32xf32>,
    %207 = vector.extract_strided_slice %5 {offsets = [10, 0], sizes = [2, 128], strides = [1, 1]} : vector<16x128xf32> to vector<2x128xf32>
    %cst_51 = arith.constant dense<0.000000e+00> : vector<2x128xf32>
    %208 = tpu.matmul %189, %11, %cst_51 {dimension_numbers = #tpu.dot_dimension_numbers<[1], [0], [0], [1], [0, 0, 1, 1], [], []>} : vector<2x32xf32>, vector<32x128xf32>, vector<2x128xf32> -> vector<2x128xf32>
    %209 = arith.addf %207, %208 : vector<2x128xf32>
    %210 = vector.extract_strided_slice %10 {offsets = [4, 0], sizes = [2, 128], strides = [1, 1]} : vector<16x128xf32> to vector<2x128xf32>
    %cst_52 = arith.constant dense<0.000000e+00> : vector<2x128xf32>
    %211 = tpu.matmul %204, %12, %cst_52 {dimension_numbers = #tpu.dot_dimension_numbers<[1], [0], [0], [1], [0, 0, 1, 1], [], []>} : vector<2x32xf32>, vector<32x128xf32>, vector<2x128xf32> -> vector<2x128xf32>
    %212 = arith.addf %210, %211 : vector<2x128xf32>
    %213 = arith.negf %209 : vector<2x128xf32>
    %214 = math.exp %213 : vector<2x128xf32>
    %cst_53 = arith.constant 1.000000e+00 : f32
    %215 = vector.broadcast %cst_53 : f32 to vector<2x128xf32>
    %216 = arith.addf %215, %214 : vector<2x128xf32>
    %217 = arith.divf %215, %216 : vector<2x128xf32>
    %218 = math.tanh %209 : vector<2x128xf32>
    %219 = vector.extract_strided_slice %217 {offsets = [0, 0], sizes = [2, 32], strides = [1, 1]} : vector<2x128xf32> to vector<2x32xf32>
    %220 = vector.extract_strided_slice %217 {offsets = [0, 32], sizes = [2, 32], strides = [1, 1]} : vector<2x128xf32> to vector<2x32xf32>
    %221 = vector.extract_strided_slice %218 {offsets = [0, 64], sizes = [2, 32], strides = [1, 1]} : vector<2x128xf32> to vector<2x32xf32>
    %222 = vector.extract_strided_slice %217 {offsets = [0, 96], sizes = [2, 32], strides = [1, 1]} : vector<2x128xf32> to vector<2x32xf32>
    %223 = arith.mulf %220, %187 : vector<2x32xf32>
    %224 = arith.mulf %219, %221 : vector<2x32xf32>
    %225 = arith.addf %223, %224 : vector<2x32xf32>
    %226 = math.tanh %225 : vector<2x32xf32>
    %227 = arith.mulf %222, %226 : vector<2x32xf32>
    %228 = arith.negf %212 : vector<2x128xf32>
    %229 = math.exp %228 : vector<2x128xf32>
    %cst_54 = arith.constant 1.000000e+00 : f32
    %230 = vector.broadcast %cst_54 : f32 to vector<2x128xf32>
    %231 = arith.addf %230, %229 : vector<2x128xf32>
    %232 = arith.divf %230, %231 : vector<2x128xf32>
    %233 = math.tanh %212 : vector<2x128xf32>
    %234 = vector.extract_strided_slice %232 {offsets = [0, 0], sizes = [2, 32], strides = [1, 1]} : vector<2x128xf32> to vector<2x32xf32>
    %235 = vector.extract_strided_slice %232 {offsets = [0, 32], sizes = [2, 32], strides = [1, 1]} : vector<2x128xf32> to vector<2x32xf32>
    %236 = vector.extract_strided_slice %233 {offsets = [0, 64], sizes = [2, 32], strides = [1, 1]} : vector<2x128xf32> to vector<2x32xf32>
    %237 = vector.extract_strided_slice %232 {offsets = [0, 96], sizes = [2, 32], strides = [1, 1]} : vector<2x128xf32> to vector<2x32xf32>
    %238 = arith.mulf %235, %202 : vector<2x32xf32>
    %239 = arith.mulf %234, %236 : vector<2x32xf32>
    %240 = arith.addf %238, %239 : vector<2x32xf32>
    %241 = math.tanh %240 : vector<2x32xf32>
    %242 = arith.mulf %237, %241 : vector<2x32xf32>
    %c10_55 = arith.constant 10 : index
    %c0_56 = arith.constant 0 : index
    %243 = vector.load %arg13[%c10_55, %c0_56] : memref<16x64xf32, #tpu.memory_space<vmem>>, vector<2x32xf32>
    tpu.vector_store %arg13[%c10_55, %c0_56], %227 {strides = array<i32>} : memref<16x64xf32, #tpu.memory_space<vmem>>, vector<2x32xf32>,
    %c4_57 = arith.constant 4 : index
    %c32_58 = arith.constant 32 : index
    %244 = vector.load %arg13[%c4_57, %c32_58] : memref<16x64xf32, #tpu.memory_space<vmem>>, vector<2x32xf32>
    tpu.vector_store %arg13[%c4_57, %c32_58], %242 {strides = array<i32>} : memref<16x64xf32, #tpu.memory_space<vmem>>, vector<2x32xf32>,
    %245 = vector.extract_strided_slice %5 {offsets = [12, 0], sizes = [2, 128], strides = [1, 1]} : vector<16x128xf32> to vector<2x128xf32>
    %cst_59 = arith.constant dense<0.000000e+00> : vector<2x128xf32>
    %246 = tpu.matmul %227, %11, %cst_59 {dimension_numbers = #tpu.dot_dimension_numbers<[1], [0], [0], [1], [0, 0, 1, 1], [], []>} : vector<2x32xf32>, vector<32x128xf32>, vector<2x128xf32> -> vector<2x128xf32>
    %247 = arith.addf %245, %246 : vector<2x128xf32>
    %248 = vector.extract_strided_slice %10 {offsets = [2, 0], sizes = [2, 128], strides = [1, 1]} : vector<16x128xf32> to vector<2x128xf32>
    %cst_60 = arith.constant dense<0.000000e+00> : vector<2x128xf32>
    %249 = tpu.matmul %242, %12, %cst_60 {dimension_numbers = #tpu.dot_dimension_numbers<[1], [0], [0], [1], [0, 0, 1, 1], [], []>} : vector<2x32xf32>, vector<32x128xf32>, vector<2x128xf32> -> vector<2x128xf32>
    %250 = arith.addf %248, %249 : vector<2x128xf32>
    %251 = arith.negf %247 : vector<2x128xf32>
    %252 = math.exp %251 : vector<2x128xf32>
    %cst_61 = arith.constant 1.000000e+00 : f32
    %253 = vector.broadcast %cst_61 : f32 to vector<2x128xf32>
    %254 = arith.addf %253, %252 : vector<2x128xf32>
    %255 = arith.divf %253, %254 : vector<2x128xf32>
    %256 = math.tanh %247 : vector<2x128xf32>
    %257 = vector.extract_strided_slice %255 {offsets = [0, 0], sizes = [2, 32], strides = [1, 1]} : vector<2x128xf32> to vector<2x32xf32>
    %258 = vector.extract_strided_slice %255 {offsets = [0, 32], sizes = [2, 32], strides = [1, 1]} : vector<2x128xf32> to vector<2x32xf32>
    %259 = vector.extract_strided_slice %256 {offsets = [0, 64], sizes = [2, 32], strides = [1, 1]} : vector<2x128xf32> to vector<2x32xf32>
    %260 = vector.extract_strided_slice %255 {offsets = [0, 96], sizes = [2, 32], strides = [1, 1]} : vector<2x128xf32> to vector<2x32xf32>
    %261 = arith.mulf %258, %225 : vector<2x32xf32>
    %262 = arith.mulf %257, %259 : vector<2x32xf32>
    %263 = arith.addf %261, %262 : vector<2x32xf32>
    %264 = math.tanh %263 : vector<2x32xf32>
    %265 = arith.mulf %260, %264 : vector<2x32xf32>
    %266 = arith.negf %250 : vector<2x128xf32>
    %267 = math.exp %266 : vector<2x128xf32>
    %cst_62 = arith.constant 1.000000e+00 : f32
    %268 = vector.broadcast %cst_62 : f32 to vector<2x128xf32>
    %269 = arith.addf %268, %267 : vector<2x128xf32>
    %270 = arith.divf %268, %269 : vector<2x128xf32>
    %271 = math.tanh %250 : vector<2x128xf32>
    %272 = vector.extract_strided_slice %270 {offsets = [0, 0], sizes = [2, 32], strides = [1, 1]} : vector<2x128xf32> to vector<2x32xf32>
    %273 = vector.extract_strided_slice %270 {offsets = [0, 32], sizes = [2, 32], strides = [1, 1]} : vector<2x128xf32> to vector<2x32xf32>
    %274 = vector.extract_strided_slice %271 {offsets = [0, 64], sizes = [2, 32], strides = [1, 1]} : vector<2x128xf32> to vector<2x32xf32>
    %275 = vector.extract_strided_slice %270 {offsets = [0, 96], sizes = [2, 32], strides = [1, 1]} : vector<2x128xf32> to vector<2x32xf32>
    %276 = arith.mulf %273, %240 : vector<2x32xf32>
    %277 = arith.mulf %272, %274 : vector<2x32xf32>
    %278 = arith.addf %276, %277 : vector<2x32xf32>
    %279 = math.tanh %278 : vector<2x32xf32>
    %280 = arith.mulf %275, %279 : vector<2x32xf32>
    %c12_63 = arith.constant 12 : index
    %c0_64 = arith.constant 0 : index
    %281 = vector.load %arg13[%c12_63, %c0_64] : memref<16x64xf32, #tpu.memory_space<vmem>>, vector<2x32xf32>
    tpu.vector_store %arg13[%c12_63, %c0_64], %265 {strides = array<i32>} : memref<16x64xf32, #tpu.memory_space<vmem>>, vector<2x32xf32>,
    %c2_65 = arith.constant 2 : index
    %c32_66 = arith.constant 32 : index
    %282 = vector.load %arg13[%c2_65, %c32_66] : memref<16x64xf32, #tpu.memory_space<vmem>>, vector<2x32xf32>
    tpu.vector_store %arg13[%c2_65, %c32_66], %280 {strides = array<i32>} : memref<16x64xf32, #tpu.memory_space<vmem>>, vector<2x32xf32>,
    %283 = vector.extract_strided_slice %5 {offsets = [14, 0], sizes = [2, 128], strides = [1, 1]} : vector<16x128xf32> to vector<2x128xf32>
    %cst_67 = arith.constant dense<0.000000e+00> : vector<2x128xf32>
    %284 = tpu.matmul %265, %11, %cst_67 {dimension_numbers = #tpu.dot_dimension_numbers<[1], [0], [0], [1], [0, 0, 1, 1], [], []>} : vector<2x32xf32>, vector<32x128xf32>, vector<2x128xf32> -> vector<2x128xf32>
    %285 = arith.addf %283, %284 : vector<2x128xf32>
    %286 = vector.extract_strided_slice %10 {offsets = [0, 0], sizes = [2, 128], strides = [1, 1]} : vector<16x128xf32> to vector<2x128xf32>
    %cst_68 = arith.constant dense<0.000000e+00> : vector<2x128xf32>
    %287 = tpu.matmul %280, %12, %cst_68 {dimension_numbers = #tpu.dot_dimension_numbers<[1], [0], [0], [1], [0, 0, 1, 1], [], []>} : vector<2x32xf32>, vector<32x128xf32>, vector<2x128xf32> -> vector<2x128xf32>
    %288 = arith.addf %286, %287 : vector<2x128xf32>
    %289 = arith.negf %285 : vector<2x128xf32>
    %290 = math.exp %289 : vector<2x128xf32>
    %cst_69 = arith.constant 1.000000e+00 : f32
    %291 = vector.broadcast %cst_69 : f32 to vector<2x128xf32>
    %292 = arith.addf %291, %290 : vector<2x128xf32>
    %293 = arith.divf %291, %292 : vector<2x128xf32>
    %294 = math.tanh %285 : vector<2x128xf32>
    %295 = vector.extract_strided_slice %293 {offsets = [0, 0], sizes = [2, 32], strides = [1, 1]} : vector<2x128xf32> to vector<2x32xf32>
    %296 = vector.extract_strided_slice %293 {offsets = [0, 32], sizes = [2, 32], strides = [1, 1]} : vector<2x128xf32> to vector<2x32xf32>
    %297 = vector.extract_strided_slice %294 {offsets = [0, 64], sizes = [2, 32], strides = [1, 1]} : vector<2x128xf32> to vector<2x32xf32>
    %298 = vector.extract_strided_slice %293 {offsets = [0, 96], sizes = [2, 32], strides = [1, 1]} : vector<2x128xf32> to vector<2x32xf32>
    %299 = arith.mulf %296, %263 : vector<2x32xf32>
    %300 = arith.mulf %295, %297 : vector<2x32xf32>
    %301 = arith.addf %299, %300 : vector<2x32xf32>
    %302 = math.tanh %301 : vector<2x32xf32>
    %303 = arith.mulf %298, %302 : vector<2x32xf32>
    %304 = arith.negf %288 : vector<2x128xf32>
    %305 = math.exp %304 : vector<2x128xf32>
    %cst_70 = arith.constant 1.000000e+00 : f32
    %306 = vector.broadcast %cst_70 : f32 to vector<2x128xf32>
    %307 = arith.addf %306, %305 : vector<2x128xf32>
    %308 = arith.divf %306, %307 : vector<2x128xf32>
    %309 = math.tanh %288 : vector<2x128xf32>
    %310 = vector.extract_strided_slice %308 {offsets = [0, 0], sizes = [2, 32], strides = [1, 1]} : vector<2x128xf32> to vector<2x32xf32>
    %311 = vector.extract_strided_slice %308 {offsets = [0, 32], sizes = [2, 32], strides = [1, 1]} : vector<2x128xf32> to vector<2x32xf32>
    %312 = vector.extract_strided_slice %309 {offsets = [0, 64], sizes = [2, 32], strides = [1, 1]} : vector<2x128xf32> to vector<2x32xf32>
    %313 = vector.extract_strided_slice %308 {offsets = [0, 96], sizes = [2, 32], strides = [1, 1]} : vector<2x128xf32> to vector<2x32xf32>
    %314 = arith.mulf %311, %278 : vector<2x32xf32>
    %315 = arith.mulf %310, %312 : vector<2x32xf32>
    %316 = arith.addf %314, %315 : vector<2x32xf32>
    %317 = math.tanh %316 : vector<2x32xf32>
    %318 = arith.mulf %313, %317 : vector<2x32xf32>
    %c14_71 = arith.constant 14 : index
    %c0_72 = arith.constant 0 : index
    %319 = vector.load %arg13[%c14_71, %c0_72] : memref<16x64xf32, #tpu.memory_space<vmem>>, vector<2x32xf32>
    tpu.vector_store %arg13[%c14_71, %c0_72], %303 {strides = array<i32>} : memref<16x64xf32, #tpu.memory_space<vmem>>, vector<2x32xf32>,
    %c0_73 = arith.constant 0 : index
    %c32_74 = arith.constant 32 : index
    %320 = vector.load %arg13[%c0_73, %c32_74] : memref<16x64xf32, #tpu.memory_space<vmem>>, vector<2x32xf32>
    tpu.vector_store %arg13[%c0_73, %c32_74], %318 {strides = array<i32>} : memref<16x64xf32, #tpu.memory_space<vmem>>, vector<2x32xf32>,
    %c0_75 = arith.constant 0 : index
    %c0_76 = arith.constant 0 : index
    %321 = vector.load %arg13[%c0_75, %c0_76] : memref<16x64xf32, #tpu.memory_space<vmem>>, vector<16x64xf32>
    %cst_77 = arith.constant dense<0.000000e+00> : vector<16x16xf32>
    %322 = tpu.matmul %321, %321, %cst_77 {dimension_numbers = #tpu.dot_dimension_numbers<[1], [1], [0], [0], [0, 0, 1, 0], [], []>} : vector<16x64xf32>, vector<16x64xf32>, vector<16x16xf32> -> vector<16x16xf32>
    %c0_78 = arith.constant 0 : index
    %c0_79 = arith.constant 0 : index
    %323 = vector.load %arg9[%c0_78, %c0_79] : memref<16x16xf32, #tpu.memory_space<vmem>>, vector<16x16xf32>
    %324 = arith.addf %322, %323 : vector<16x16xf32>
    %cst_80 = arith.constant dense<0xFF800000> : vector<16xf32>
    %325 = vector.multi_reduction <maximumf>, %324, %cst_80 [1] : vector<16x16xf32> to vector<16xf32>
    %326 = vector.shape_cast %325 : vector<16xf32> to vector<16x1xf32>
    %327 = vector.broadcast %326 : vector<16x1xf32> to vector<16x16xf32>
    %328 = arith.subf %324, %327 : vector<16x16xf32>
    %329 = math.exp %328 : vector<16x16xf32>
    %cst_81 = arith.constant dense<0.000000e+00> : vector<16xf32>
    %330 = vector.multi_reduction <add>, %329, %cst_81 [1] : vector<16x16xf32> to vector<16xf32>
    %331 = vector.shape_cast %330 : vector<16xf32> to vector<16x1xf32>
    %332 = tpu.reciprocal %331 {approx = true} : vector<16x1xf32> -> vector<16x1xf32>
    %333 = vector.broadcast %332 : vector<16x1xf32> to vector<16x16xf32>
    %334 = arith.mulf %329, %333 : vector<16x16xf32>
    %cst_82 = arith.constant dense<0.000000e+00> : vector<16x32xf32>
    %335 = tpu.matmul %334, %0, %cst_82 {dimension_numbers = #tpu.dot_dimension_numbers<[1], [0], [0], [1], [0, 0, 1, 1], [], []>} : vector<16x16xf32>, vector<16x32xf32>, vector<16x32xf32> -> vector<16x32xf32>
    %cst_83 = arith.constant 0.000000e+00 : f32
    %336 = vector.broadcast %cst_83 : f32 to vector<16x64xf32>
    %337 = arith.maximumf %321, %336 : vector<16x64xf32>
    %cst_84 = arith.constant 0.000000e+00 : f32
    %338 = vector.broadcast %cst_84 : f32 to vector<16x32xf32>
    %339 = arith.maximumf %335, %338 : vector<16x32xf32>
    %340 = vector.extract_strided_slice %337 {offsets = [0, 0], sizes = [2, 64], strides = [1, 1]} : vector<16x64xf32> to vector<2x64xf32>
    %341 = vector.extract_strided_slice %339 {offsets = [0, 0], sizes = [2, 32], strides = [1, 1]} : vector<16x32xf32> to vector<2x32xf32>
    %342 = vector.extract_strided_slice %337 {offsets = [2, 0], sizes = [2, 64], strides = [1, 1]} : vector<16x64xf32> to vector<2x64xf32>
    %343 = arith.maximumf %340, %342 : vector<2x64xf32>
    %344 = vector.extract_strided_slice %339 {offsets = [2, 0], sizes = [2, 32], strides = [1, 1]} : vector<16x32xf32> to vector<2x32xf32>
    %345 = arith.maximumf %341, %344 : vector<2x32xf32>
    %346 = vector.extract_strided_slice %337 {offsets = [4, 0], sizes = [2, 64], strides = [1, 1]} : vector<16x64xf32> to vector<2x64xf32>
    %347 = arith.maximumf %343, %346 : vector<2x64xf32>
    %348 = vector.extract_strided_slice %339 {offsets = [4, 0], sizes = [2, 32], strides = [1, 1]} : vector<16x32xf32> to vector<2x32xf32>
    %349 = arith.maximumf %345, %348 : vector<2x32xf32>
    %350 = vector.extract_strided_slice %337 {offsets = [6, 0], sizes = [2, 64], strides = [1, 1]} : vector<16x64xf32> to vector<2x64xf32>
    %351 = arith.maximumf %347, %350 : vector<2x64xf32>
    %352 = vector.extract_strided_slice %339 {offsets = [6, 0], sizes = [2, 32], strides = [1, 1]} : vector<16x32xf32> to vector<2x32xf32>
    %353 = arith.maximumf %349, %352 : vector<2x32xf32>
    %354 = vector.extract_strided_slice %337 {offsets = [8, 0], sizes = [2, 64], strides = [1, 1]} : vector<16x64xf32> to vector<2x64xf32>
    %355 = arith.maximumf %351, %354 : vector<2x64xf32>
    %356 = vector.extract_strided_slice %339 {offsets = [8, 0], sizes = [2, 32], strides = [1, 1]} : vector<16x32xf32> to vector<2x32xf32>
    %357 = arith.maximumf %353, %356 : vector<2x32xf32>
    %358 = vector.extract_strided_slice %337 {offsets = [10, 0], sizes = [2, 64], strides = [1, 1]} : vector<16x64xf32> to vector<2x64xf32>
    %359 = arith.maximumf %355, %358 : vector<2x64xf32>
    %360 = vector.extract_strided_slice %339 {offsets = [10, 0], sizes = [2, 32], strides = [1, 1]} : vector<16x32xf32> to vector<2x32xf32>
    %361 = arith.maximumf %357, %360 : vector<2x32xf32>
    %362 = vector.extract_strided_slice %337 {offsets = [12, 0], sizes = [2, 64], strides = [1, 1]} : vector<16x64xf32> to vector<2x64xf32>
    %363 = arith.maximumf %359, %362 : vector<2x64xf32>
    %364 = vector.extract_strided_slice %339 {offsets = [12, 0], sizes = [2, 32], strides = [1, 1]} : vector<16x32xf32> to vector<2x32xf32>
    %365 = arith.maximumf %361, %364 : vector<2x32xf32>
    %366 = vector.extract_strided_slice %337 {offsets = [14, 0], sizes = [2, 64], strides = [1, 1]} : vector<16x64xf32> to vector<2x64xf32>
    %367 = arith.maximumf %363, %366 : vector<2x64xf32>
    %368 = vector.extract_strided_slice %339 {offsets = [14, 0], sizes = [2, 32], strides = [1, 1]} : vector<16x32xf32> to vector<2x32xf32>
    %369 = arith.maximumf %365, %368 : vector<2x32xf32>
    %c0_85 = arith.constant 0 : index
    %c0_86 = arith.constant 0 : index
    %370 = vector.load %arg10[%c0_85, %c0_86] : memref<96x128xf32, #tpu.memory_space<vmem>>, vector<64x128xf32>
    %cst_87 = arith.constant dense<0.000000e+00> : vector<2x128xf32>
    %371 = tpu.matmul %367, %370, %cst_87 {dimension_numbers = #tpu.dot_dimension_numbers<[1], [0], [0], [1], [0, 0, 1, 1], [], []>} : vector<2x64xf32>, vector<64x128xf32>, vector<2x128xf32> -> vector<2x128xf32>
    %c64 = arith.constant 64 : index
    %c0_88 = arith.constant 0 : index
    %372 = vector.load %arg10[%c64, %c0_88] : memref<96x128xf32, #tpu.memory_space<vmem>>, vector<32x128xf32>
    %cst_89 = arith.constant dense<0.000000e+00> : vector<2x128xf32>
    %373 = tpu.matmul %369, %372, %cst_89 {dimension_numbers = #tpu.dot_dimension_numbers<[1], [0], [0], [1], [0, 0, 1, 1], [], []>} : vector<2x32xf32>, vector<32x128xf32>, vector<2x128xf32> -> vector<2x128xf32>
    %374 = arith.addf %371, %373 : vector<2x128xf32>
    %c0_90 = arith.constant 0 : index
    %c0_91 = arith.constant 0 : index
    %375 = vector.load %arg11[%c0_90, %c0_91] : memref<1x128xf32, #tpu.memory_space<vmem>>, vector<1x128xf32>
    %376 = vector.broadcast %375 : vector<1x128xf32> to vector<2x128xf32>
    %377 = arith.addf %374, %376 : vector<2x128xf32>
    %c0_92 = arith.constant 0 : index
    %c0_93 = arith.constant 0 : index
    %378 = vector.load %arg12[%c0_92, %c0_93] : memref<2x128xf32, #tpu.memory_space<vmem>>, vector<2x128xf32>
    tpu.vector_store %arg12[%c0_92, %c0_93], %377 {strides = array<i32>} : memref<2x128xf32, #tpu.memory_space<vmem>>, vector<2x128xf32>,
    return
  }
  func.func @transform_0(%arg0: i32) -> (i32, i32) {
    %c0_i32 = arith.constant 0 : i32
    %c0_i32_0 = arith.constant 0 : i32
    %c0_i32_1 = arith.constant 0 : i32
    return %c0_i32, %c0_i32_0 : i32, i32
  }
  func.func @transform_1(%arg0: i32) -> (i32, i32) {
    %c0_i32 = arith.constant 0 : i32
    %c0_i32_0 = arith.constant 0 : i32
    %c0_i32_1 = arith.constant 0 : i32
    return %c0_i32, %c0_i32_0 : i32, i32
  }
  func.func @transform_2(%arg0: i32) -> (i32, i32) {
    %c0_i32 = arith.constant 0 : i32
    %c0_i32_0 = arith.constant 0 : i32
    %c0_i32_1 = arith.constant 0 : i32
    return %c0_i32, %c0_i32_0 : i32, i32
  }
  func.func @transform_3(%arg0: i32) -> (i32, i32) {
    %c0_i32 = arith.constant 0 : i32
    %c0_i32_0 = arith.constant 0 : i32
    %c0_i32_1 = arith.constant 0 : i32
    return %c0_i32, %c0_i32_0 : i32, i32
  }
  func.func @transform_4(%arg0: i32) -> (i32, i32) {
    %c0_i32 = arith.constant 0 : i32
    %c0_i32_0 = arith.constant 0 : i32
    %c0_i32_1 = arith.constant 0 : i32
    return %c0_i32, %c0_i32_0 : i32, i32
  }
  func.func @transform_5(%arg0: i32) -> (i32, i32) {
    %c0_i32 = arith.constant 0 : i32
    %c0_i32_0 = arith.constant 0 : i32
    %c0_i32_1 = arith.constant 0 : i32
    return %c0_i32, %c0_i32_0 : i32, i32
  }
  func.func @transform_6(%arg0: i32) -> (i32, i32) {
    %c0_i32 = arith.constant 0 : i32
    %c0_i32_0 = arith.constant 0 : i32
    %c0_i32_1 = arith.constant 0 : i32
    return %c0_i32, %c0_i32_0 : i32, i32
  }
  func.func @transform_7(%arg0: i32) -> (i32, i32, i32) {
    %c0_i32 = arith.constant 0 : i32
    %c0_i32_0 = arith.constant 0 : i32
    %c0_i32_1 = arith.constant 0 : i32
    %c0_i32_2 = arith.constant 0 : i32
    return %c0_i32, %c0_i32_0, %c0_i32_1 : i32, i32, i32
  }
  func.func @transform_8(%arg0: i32) -> (i32, i32) {
    %c0_i32 = arith.constant 0 : i32
    %c0_i32_0 = arith.constant 0 : i32
    %c0_i32_1 = arith.constant 0 : i32
    return %c0_i32, %c0_i32_0 : i32, i32
  }
  func.func @transform_9(%arg0: i32) -> (i32, i32) {
    %c0_i32 = arith.constant 0 : i32
    %c0_i32_0 = arith.constant 0 : i32
    %c0_i32_1 = arith.constant 0 : i32
    return %c0_i32, %c0_i32_0 : i32, i32
  }
  func.func @transform_10(%arg0: i32) -> (i32, i32) {
    %c0_i32 = arith.constant 0 : i32
    %c0_i32_0 = arith.constant 0 : i32
    %c0_i32_1 = arith.constant 0 : i32
    return %c0_i32, %c0_i32_0 : i32, i32
  }
  func.func @transform_11(%arg0: i32) -> (i32, i32) {
    %c0_i32 = arith.constant 0 : i32
    %c0_i32_0 = arith.constant 0 : i32
    %c0_i32_1 = arith.constant 0 : i32
    return %c0_i32, %c0_i32_0 : i32, i32
  }
}

</mosaic_0001>

<llo_original>
// kernel: tpu_custom_call.1
$region0: #{tpu_custom_call.1}
  #allocation0 [shape = 'u32[]', space=smem, size = 0x4, offset = 0x4, fixed_abs, tag = 'smem constant byte address 0x4 - core index']
  #allocation1 [shape = 'u32[72,128]{1,0:T(1,128)}', space=vmem, size = 0x9000, scoped, tag = 'internal scratch']
  #allocation2 [shape = 'f32[16,64]{1,0:T(8,128)}', space=vmem, size = 0x2000, scoped, tag = 'scratch operand']
  %s0 = inlined_call_operand.hbm [shape: f32[16,32], index: 0, kind: input, shape index: {}]
  %s1 = inlined_call_operand.hbm [shape: f32[32,128], index: 1, kind: input, shape index: {}]
  %s2 = inlined_call_operand.hbm [shape: f32[32,128], index: 2, kind: input, shape index: {}]
  %s3 = inlined_call_operand.vmem [shape: f32[1,128], index: 3, kind: input, shape index: {}]
  %s4 = inlined_call_operand.hbm [shape: f32[32,128], index: 4, kind: input, shape index: {}]
  %s5 = inlined_call_operand.hbm [shape: f32[32,128], index: 5, kind: input, shape index: {}]
  %s6 = inlined_call_operand.vmem [shape: f32[1,128], index: 6, kind: input, shape index: {}]
  %s7 = inlined_call_operand.vmem [shape: f32[2,2,32], index: 7, kind: input, shape index: {}]
  %s8 = inlined_call_operand.hbm [shape: f32[16,16], index: 8, kind: input, shape index: {}]
  %s9 = inlined_call_operand.hbm [shape: f32[96,128], index: 9, kind: input, shape index: {}]
  %s10 = inlined_call_operand.vmem [shape: f32[1,128], index: 10, kind: input, shape index: {}]
  %s11 = inlined_call_operand.hbm [shape: f32[2,128], index: 11, kind: output, shape index: {}]
  %s12 = sld [smem:[#allocation0]]
  $region82: #{tpu_custom_call.1} parent=0
    _
  %s14 = ssub.s32 1, %s12
  %s15 = scalar_select 0, %s14, %s12
  $region1: #{tpu_custom_call.1} parent=0
    #allocation3 [shape = 'u8[8192]{0}', space=vmem, size = 0x2000, scoped, tag = 'input window, operand 0, single buffered']
    #allocation4 [shape = 's32[1]{0}', space=sflag, size = 0x4, scoped, tag = 'scoped memory for tpu_custom_call.1']
    #allocation5 [shape = 's32[1]{0}', space=sflag, size = 0x4, scoped, tag = 'scoped memory for tpu_custom_call.1']
    #allocation6 [shape = 'u8[16384]{0}', space=vmem, size = 0x4000, scoped, tag = 'input window, operand 1, single buffered']
    #allocation7 [shape = 's32[1]{0}', space=sflag, size = 0x4, scoped, tag = 'scoped memory for tpu_custom_call.1']
    #allocation8 [shape = 'u8[16384]{0}', space=vmem, size = 0x4000, scoped, tag = 'input window, operand 2, single buffered']
    #allocation9 [shape = 'u8[16384]{0}', space=vmem, size = 0x4000, scoped, tag = 'input window, operand 4, single buffered']
    #allocation10 [shape = 's32[1]{0}', space=sflag, size = 0x4, scoped, tag = 'scoped memory for tpu_custom_call.1']
    #allocation11 [shape = 'u8[16384]{0}', space=vmem, size = 0x4000, scoped, tag = 'input window, operand 5, single buffered']
    #allocation12 [shape = 'u8[8192]{0}', space=vmem, size = 0x2000, scoped, tag = 'input window, operand 8, single buffered']
    #allocation13 [shape = 's32[1]{0}', space=sflag, size = 0x4, scoped, tag = 'scoped memory for tpu_custom_call.1']
    #allocation14 [shape = 'u8[49152]{0}', space=vmem, size = 0xc000, scoped, tag = 'input window, operand 9, single buffered']
    #allocation15 [shape = 'u8[1024]{0}', space=vmem, size = 0x400, scoped, tag = 'output window, operand 0, single buffered']
    %16 = vsyncpa [#allocation4], 0
    %17 = vsyncpa [#allocation7], 0
    %18 = vsyncpa [#allocation10], 0
    %19 = vsyncpa [#allocation13], 0
    %20 = vsyncpa [#allocation5], 0
    // Predicated region
    $region2: #{tpu_custom_call.1} parent=1 // pred_check
      _
    $region3: #{tpu_custom_call.1} parent=1 // pred_check_branch
      %22 = sbr.rel (0) target = $region5
    $region4: #{tpu_custom_call.1} parent=1 // pred_region
      %24 = vsyncadd [#allocation4], 0
      %s25 = sshll.u32 %s0, 4
      %s26 = int_to_ptr.hbm [resolvable:$true] %s25
      %s27 = sshll.u32 [#allocation3], 4
      %s28 = int_to_ptr.vmem [resolvable:$true] %s27
      %33 = dma.hbm_to_vmem [thread:$0]  %s26, 256, %s28, [#allocation4], 128, 128, 8
    $region5: #{tpu_custom_call.1} parent=1 // pred_fallthru
      _
    // Predicated region
    $region6: #{tpu_custom_call.1} parent=1 // pred_check
      _
    $region7: #{tpu_custom_call.1} parent=1 // pred_check_branch
      %35 = sbr.rel (0) target = $region9
    $region8: #{tpu_custom_call.1} parent=1 // pred_region
      %37 = vsyncadd [#allocation7], 0
      %s38 = sshll.u32 %s1, 4
      %s39 = int_to_ptr.hbm [resolvable:$true] %s38
      %s40 = sshll.u32 [#allocation6], 4
      %s41 = int_to_ptr.vmem [resolvable:$true] %s40
      %46 = dma.hbm_to_vmem [thread:$0]  %s39, 512, %s41, [#allocation7], 128, 128, 8
    $region9: #{tpu_custom_call.1} parent=1 // pred_fallthru
      _
    // Predicated region
    $region10: #{tpu_custom_call.1} parent=1 // pred_check
      _
    $region11: #{tpu_custom_call.1} parent=1 // pred_check_branch
      %48 = sbr.rel (0) target = $region13
    $region12: #{tpu_custom_call.1} parent=1 // pred_region
      %50 = vsyncadd [#allocation7], 0
      %s51 = sshll.u32 %s2, 4
      %s52 = int_to_ptr.hbm [resolvable:$true] %s51
      %s53 = sshll.u32 [#allocation8], 4
      %s54 = int_to_ptr.vmem [resolvable:$true] %s53
      %59 = dma.hbm_to_vmem [thread:$0]  %s52, 512, %s54, [#allocation7], 128, 128, 8
    $region13: #{tpu_custom_call.1} parent=1 // pred_fallthru
      _
    // Predicated region
    $region14: #{tpu_custom_call.1} parent=1 // pred_check
      _
    $region15: #{tpu_custom_call.1} parent=1 // pred_check_branch
      %61 = sbr.rel (0) target = $region17
    $region16: #{tpu_custom_call.1} parent=1 // pred_region
      _
    $region17: #{tpu_custom_call.1} parent=1 // pred_fallthru
      _
    // Predicated region
    $region18: #{tpu_custom_call.1} parent=1 // pred_check
      _
    $region19: #{tpu_custom_call.1} parent=1 // pred_check_branch
      %63 = sbr.rel (0) target = $region21
    $region20: #{tpu_custom_call.1} parent=1 // pred_region
      %65 = vsyncadd [#allocation10], 0
      %s66 = sshll.u32 %s4, 4
      %s67 = int_to_ptr.hbm [resolvable:$true] %s66
      %s68 = sshll.u32 [#allocation9], 4
      %s69 = int_to_ptr.vmem [resolvable:$true] %s68
      %74 = dma.hbm_to_vmem [thread:$0]  %s67, 512, %s69, [#allocation10], 128, 128, 8
    $region21: #{tpu_custom_call.1} parent=1 // pred_fallthru
      _
    // Predicated region
    $region22: #{tpu_custom_call.1} parent=1 // pred_check
      _
    $region23: #{tpu_custom_call.1} parent=1 // pred_check_branch
      %76 = sbr.rel (0) target = $region25
    $region24: #{tpu_custom_call.1} parent=1 // pred_region
      %78 = vsyncadd [#allocation10], 0
      %s79 = sshll.u32 %s5, 4
      %s80 = int_to_ptr.hbm [resolvable:$true] %s79
      %s81 = sshll.u32 [#allocation11], 4
      %s82 = int_to_ptr.vmem [resolvable:$true] %s81
      %87 = dma.hbm_to_vmem [thread:$0]  %s80, 512, %s82, [#allocation10], 128, 128, 8
    $region25: #{tpu_custom_call.1} parent=1 // pred_fallthru
      _
    // Predicated region
    $region26: #{tpu_custom_call.1} parent=1 // pred_check
      _
    $region27: #{tpu_custom_call.1} parent=1 // pred_check_branch
      %89 = sbr.rel (0) target = $region29
    $region28: #{tpu_custom_call.1} parent=1 // pred_region
      _
    $region29: #{tpu_custom_call.1} parent=1 // pred_fallthru
      _
    // Predicated region
    $region30: #{tpu_custom_call.1} parent=1 // pred_check
      _
    $region31: #{tpu_custom_call.1} parent=1 // pred_check_branch
      %91 = sbr.rel (0) target = $region33
    $region32: #{tpu_custom_call.1} parent=1 // pred_region
      _
    $region33: #{tpu_custom_call.1} parent=1 // pred_fallthru
      _
    // Predicated region
    $region34: #{tpu_custom_call.1} parent=1 // pred_check
      _
    $region35: #{tpu_custom_call.1} parent=1 // pred_check_branch
      %93 = sbr.rel (0) target = $region37
    $region36: #{tpu_custom_call.1} parent=1 // pred_region
      %95 = vsyncadd [#allocation13], 0
      %s96 = sshll.u32 %s8, 4
      %s97 = int_to_ptr.hbm [resolvable:$true] %s96
      %s98 = sshll.u32 [#allocation12], 4
      %s99 = int_to_ptr.vmem [resolvable:$true] %s98
      %104 = dma.hbm_to_vmem [thread:$0]  %s97, 256, %s99, [#allocation13], 128, 128, 8
    $region37: #{tpu_custom_call.1} parent=1 // pred_fallthru
      _
    // Predicated region
    $region38: #{tpu_custom_call.1} parent=1 // pred_check
      _
    $region39: #{tpu_custom_call.1} parent=1 // pred_check_branch
      %106 = sbr.rel (0) target = $region41
    $region40: #{tpu_custom_call.1} parent=1 // pred_region
      %108 = vsyncadd [#allocation13], 0
      %s109 = sshll.u32 %s9, 4
      %s110 = int_to_ptr.hbm [resolvable:$true] %s109
      %s111 = sshll.u32 [#allocation14], 4
      %s112 = int_to_ptr.vmem [resolvable:$true] %s111
      %117 = dma.hbm_to_vmem [thread:$0]  %s110, 1536, %s112, [#allocation13], 128, 128, 8
    $region41: #{tpu_custom_call.1} parent=1 // pred_fallthru
      _
    // Predicated region
    $region42: #{tpu_custom_call.1} parent=1 // pred_check
      _
    $region43: #{tpu_custom_call.1} parent=1 // pred_check_branch
      %119 = sbr.rel (0) target = $region45
    $region44: #{tpu_custom_call.1} parent=1 // pred_region
      _
    $region45: #{tpu_custom_call.1} parent=1 // pred_fallthru
      _
    // Predicated region
    $region46: #{tpu_custom_call.1} parent=1 // pred_check
      _
    $region47: #{tpu_custom_call.1} parent=1 // pred_check_branch
      %121 = sbr.rel (0) target = $region49
    $region48: #{tpu_custom_call.1} parent=1 // pred_region
      %123 = dma.done [#allocation4], 256
    $region49: #{tpu_custom_call.1} parent=1 // pred_fallthru
      _
    // Predicated region
    $region50: #{tpu_custom_call.1} parent=1 // pred_check
      _
    $region51: #{tpu_custom_call.1} parent=1 // pred_check_branch
      %125 = sbr.rel (0) target = $region53
    $region52: #{tpu_custom_call.1} parent=1 // pred_region
      %127 = dma.done [#allocation7], 512
    $region53: #{tpu_custom_call.1} parent=1 // pred_fallthru
      _
    // Predicated region
    $region54: #{tpu_custom_call.1} parent=1 // pred_check
      _
    $region55: #{tpu_custom_call.1} parent=1 // pred_check_branch
      %129 = sbr.rel (0) target = $region57
    $region56: #{tpu_custom_call.1} parent=1 // pred_region
      %131 = dma.done [#allocation7], 512
    $region57: #{tpu_custom_call.1} parent=1 // pred_fallthru
      _
    // Predicated region
    $region58: #{tpu_custom_call.1} parent=1 // pred_check
      _
    $region59: #{tpu_custom_call.1} parent=1 // pred_check_branch
      %133 = sbr.rel (0) target = $region61
    $region60: #{tpu_custom_call.1} parent=1 // pred_region
      %135 = dma.done [#allocation10], 512
    $region61: #{tpu_custom_call.1} parent=1 // pred_fallthru
      _
    // Predicated region
    $region62: #{tpu_custom_call.1} parent=1 // pred_check
      _
    $region63: #{tpu_custom_call.1} parent=1 // pred_check_branch
      %137 = sbr.rel (0) target = $region65
    $region64: #{tpu_custom_call.1} parent=1 // pred_region
      %139 = dma.done [#allocation10], 512
    $region65: #{tpu_custom_call.1} parent=1 // pred_fallthru
      _
    // Predicated region
    $region66: #{tpu_custom_call.1} parent=1 // pred_check
      _
    $region67: #{tpu_custom_call.1} parent=1 // pred_check_branch
      %141 = sbr.rel (0) target = $region69
    $region68: #{tpu_custom_call.1} parent=1 // pred_region
      %143 = dma.done [#allocation13], 256
    $region69: #{tpu_custom_call.1} parent=1 // pred_fallthru
      _
    // Predicated region
    $region70: #{tpu_custom_call.1} parent=1 // pred_check
      _
    $region71: #{tpu_custom_call.1} parent=1 // pred_check_branch
      %145 = sbr.rel (0) target = $region73
    $region72: #{tpu_custom_call.1} parent=1 // pred_region
      %147 = dma.done [#allocation13], 1536
    $region73: #{tpu_custom_call.1} parent=1 // pred_fallthru
      _
    %v148 = vld [vmem:[#allocation3] sm:$0xff]
    %v149 = vld [vmem:[#allocation3 + $0x8] sm:$0xff]
    %v150 = vld [vmem:[#allocation6] sm:$0xff]
    %v151 = vld [vmem:[#allocation6 + $0x8] sm:$0xff]
    %v152 = vld [vmem:[#allocation6 + $0x10] sm:$0xff]
    %v153 = vld [vmem:[#allocation6 + $0x18] sm:$0xff]
    %v154 = vld [vmem:[%s3] sm:$0x1]
    %v156 = vperm.slane %v154, 0
    %vm158 = vcmask 261120
    %v160 = vsel %vm158, %v148, 0
    %v163 = vsel %vm158, %v149, 0
    %165 = vmatpush.msra.mxu0 0.0
    %166 = vmatpush.msra.mxu0 0.0
    %167 = vmatpush.msra.mxu0 0.0
    %168 = vmatpush.msra.mxu0 0.0
    %169 = vmatpush.msra.mxu0 0.0
    %170 = vmatpush.msra.mxu0 0.0
    %171 = vmatpush.msra.mxu0 0.0
    %172 = vmatpush.msra.mxu0 0.0
    %173 = vmatpush.msra.mxu0 0.0
    %174 = vmatpush.msra.mxu0 0.0
    %175 = vmatpush.msra.mxu0 0.0
    %176 = vmatpush.msra.mxu0 0.0
    %177 = vmatpush.msra.mxu0 %v153
    %178 = vmatpush.msra.mxu0 %v152
    %179 = vmatpush.msra.mxu0 %v151
    %180 = vmatpush.msra.mxu0 %v150
    %181 = vmatmul.f32.gmra.mxu0 %v160
    %v182 = vpop.f32.mrf.mxu0
    %v183 = vadd.f32 %v156, %v182
    %184 = vmatmul.f32.gmra.mxu0 %v163
    %v185 = vpop.f32.mrf.mxu0
    %v186 = vadd.f32 %v156, %v185
    %187 = vdwg.mxu0
    %v188 = vld [vmem:[#allocation9] sm:$0xff]
    %v189 = vld [vmem:[#allocation9 + $0x8] sm:$0xff]
    %v190 = vld [vmem:[#allocation9 + $0x10] sm:$0xff]
    %v191 = vld [vmem:[#allocation9 + $0x18] sm:$0xff]
    %v192 = vld [vmem:[%s6] sm:$0x1]
    %v194 = vperm.slane %v192, 0
    %196 = vmatpush.msra.mxu0 0.0
    %197 = vmatpush.msra.mxu0 0.0
    %198 = vmatpush.msra.mxu0 0.0
    %199 = vmatpush.msra.mxu0 0.0
    %200 = vmatpush.msra.mxu0 0.0
    %201 = vmatpush.msra.mxu0 0.0
    %202 = vmatpush.msra.mxu0 0.0
    %203 = vmatpush.msra.mxu0 0.0
    %204 = vmatpush.msra.mxu0 0.0
    %205 = vmatpush.msra.mxu0 0.0
    %206 = vmatpush.msra.mxu0 0.0
    %207 = vmatpush.msra.mxu0 0.0
    %208 = vmatpush.msra.mxu0 %v191
    %209 = vmatpush.msra.mxu0 %v190
    %210 = vmatpush.msra.mxu0 %v189
    %211 = vmatpush.msra.mxu0 %v188
    %212 = vmatmul.f32.gmra.mxu0 %v160
    %v213 = vpop.f32.mrf.mxu0
    %v214 = vadd.f32 %v194, %v213
    %215 = vmatmul.f32.gmra.mxu0 %v163
    %v216 = vpop.f32.mrf.mxu0
    %v217 = vadd.f32 %v194, %v216
    %218 = vdwg.mxu0
    %v219 = vld [vmem:[#allocation8] sm:$0xff]
    %v220 = vld [vmem:[#allocation8 + $0x8] sm:$0xff]
    %v221 = vld [vmem:[#allocation8 + $0x10] sm:$0xff]
    %v222 = vld [vmem:[#allocation8 + $0x18] sm:$0xff]
    %v223 = vld [vmem:[#allocation11] sm:$0xff]
    %v224 = vld [vmem:[#allocation11 + $0x8] sm:$0xff]
    %v225 = vld [vmem:[#allocation11 + $0x10] sm:$0xff]
    %v226 = vld [vmem:[#allocation11 + $0x18] sm:$0xff]
    %v227 = vld [vmem:[%s7] sm:$0x3]
    %s228 = scalar_lea.vmem %s7, 2
    %v229 = vld [vmem:[%s228] sm:$0x3]
    %v231 = vsel %vm158, %v227, 0
    %233 = vmatpush.msra.mxu0 0.0
    %234 = vmatpush.msra.mxu0 0.0
    %235 = vmatpush.msra.mxu0 0.0
    %236 = vmatpush.msra.mxu0 0.0
    %237 = vmatpush.msra.mxu0 0.0
    %238 = vmatpush.msra.mxu0 0.0
    %239 = vmatpush.msra.mxu0 0.0
    %240 = vmatpush.msra.mxu0 0.0
    %241 = vmatpush.msra.mxu0 0.0
    %242 = vmatpush.msra.mxu0 0.0
    %243 = vmatpush.msra.mxu0 0.0
    %244 = vmatpush.msra.mxu0 0.0
    %245 = vmatpush.msra.mxu0 %v222
    %246 = vmatpush.msra.mxu0 %v221
    %247 = vmatpush.msra.mxu0 %v220
    %248 = vmatpush.msra.mxu0 %v219
    %249 = vmatmul.f32.gmra.mxu0 %v231
    %v250 = vpop.f32.mrf.mxu0
    %v251 = vadd.f32 0.0, %v250
    %252 = vdwg.mxu0
    %v253 = vadd.f32 %v183, %v251
    %v255 = vsel %vm158, %v229, 0
    %257 = vmatpush.msra.mxu0 0.0
    %258 = vmatpush.msra.mxu0 0.0
    %259 = vmatpush.msra.mxu0 0.0
    %260 = vmatpush.msra.mxu0 0.0
    %261 = vmatpush.msra.mxu0 0.0
    %262 = vmatpush.msra.mxu0 0.0
    %263 = vmatpush.msra.mxu0 0.0
    %264 = vmatpush.msra.mxu0 0.0
    %265 = vmatpush.msra.mxu0 0.0
    %266 = vmatpush.msra.mxu0 0.0
    %267 = vmatpush.msra.mxu0 0.0
    %268 = vmatpush.msra.mxu0 0.0
    %269 = vmatpush.msra.mxu0 %v226
    %270 = vmatpush.msra.mxu0 %v225
    %271 = vmatpush.msra.mxu0 %v224
    %272 = vmatpush.msra.mxu0 %v223
    %273 = vmatmul.f32.gmra.mxu0 %v255
    %v274 = vpop.f32.mrf.mxu0
    %v275 = vadd.f32 0.0, %v274
    %276 = vdwg.mxu0
    %v278 = vrot.slane %v275, 2
    %v280 = vadd.f32 %v217, %v278
    %v281 = vxor.u32 %v253, 2147483648
    %v282 = vmul.f32 %v281, 1.442695
    %v283 = vpow.pop %v282
    %v284 = vadd.f32 %v283, 1.0
    %v285 = vrcp.pop %v284
    %v286 = vmul.f32 %v284, %v285
    %v287 = vsub.f32 1.0, %v286
    %v288 = vmul.f32 %v285, %v287
    %v289 = vadd.f32 %v285, %v288
    %vm290 = vweird.f32 %v284
    %vm291 = vweird.f32 %v285
    %vm292 = vmor %vm290, %vm291
    %v293 = vsel %vm292, %v285, %v289
    %v294 = vand.u32 2147483647, %v284
    %vm295 = vcmp.eq.f32.partialorder %v294, 8.507059e+37
    %v296 = vand.u32 %v284, 2147483648
    %v297 = vor.u32 1.1754944e-38, %v296
    %v298 = vsel %vm295, %v297, %v293
    %v299 = vmul.f32 1.0, %v298
    %v300 = vtanh.pop %v253
    %301 = vrot.lane.b32.xlu0 %v227, 32
    %v302 = vpop.permute.xlu0 %301
    %v304 = vmul.f32 %v299, %v302
    %306 = vrot.lane.b32.xlu0 %v300, 64
    %v307 = vpop.permute.xlu0 %306
    %v309 = vmul.f32 %v299, %v307
    %311 = vrot.lane.b32.xlu0 %v309, 32
    %v312 = vpop.permute.xlu0 %311
    %v314 = vadd.f32 %v304, %v312
    %v315 = vtanh.pop %v314
    %317 = vrot.lane.b32.xlu0 %v315, 64
    %v318 = vpop.permute.xlu0 %317
    %v320 = vmul.f32 %v299, %v318
    %v321 = vxor.u32 %v280, 2147483648
    %v322 = vmul.f32 %v321, 1.442695
    %v323 = vpow.pop %v322
    %v324 = vadd.f32 %v323, 1.0
    %v325 = vrcp.pop %v324
    %v326 = vmul.f32 %v324, %v325
    %v327 = vsub.f32 1.0, %v326
    %v328 = vmul.f32 %v325, %v327
    %v329 = vadd.f32 %v325, %v328
    %vm330 = vweird.f32 %v324
    %vm331 = vweird.f32 %v325
    %vm332 = vmor %vm330, %vm331
    %v333 = vsel %vm332, %v325, %v329
    %v334 = vand.u32 2147483647, %v324
    %vm335 = vcmp.eq.f32.partialorder %v334, 8.507059e+37
    %v336 = vand.u32 %v324, 2147483648
    %v337 = vor.u32 1.1754944e-38, %v336
    %v338 = vsel %vm335, %v337, %v333
    %v339 = vmul.f32 1.0, %v338
    %v340 = vtanh.pop %v280
    %v341 = vrot.slane %v229, 2
    %342 = vrot.lane.b32.xlu0 %v341, 32
    %v343 = vpop.permute.xlu0 %342
    %v345 = vmul.f32 %v339, %v343
    %347 = vrot.lane.b32.xlu0 %v340, 64
    %v348 = vpop.permute.xlu0 %347
    %v350 = vmul.f32 %v339, %v348
    %352 = vrot.lane.b32.xlu0 %v350, 32
    %v353 = vpop.permute.xlu0 %352
    %v355 = vadd.f32 %v345, %v353
    %v356 = vtanh.pop %v355
    %358 = vrot.lane.b32.xlu0 %v356, 64
    %v359 = vpop.permute.xlu0 %358
    %v361 = vmul.f32 %v339, %v359
    %363 = vrot.lane.b32.xlu0 %v320, 32
    %v364 = vpop.permute.xlu0 %363
    %vm366 = vcmask 254976
    %367 = vst.msk [vmem:[#allocation2] sm:$0x3] %vm366, %v364
    %369 = vrot.lane.b32.xlu0 %v361, 64
    %v370 = vpop.permute.xlu0 %369
    %vm372 = vcmask 523526
    %373 = vst.msk [vmem:[#allocation2 + $0x8] sm:$0xc0] %vm372, %v370
    %v374 = vsel %vm158, %v364, 0
    %376 = vmatpush.msra.mxu0 0.0
    %377 = vmatpush.msra.mxu0 0.0
    %378 = vmatpush.msra.mxu0 0.0
    %379 = vmatpush.msra.mxu0 0.0
    %380 = vmatpush.msra.mxu0 0.0
    %381 = vmatpush.msra.mxu0 0.0
    %382 = vmatpush.msra.mxu0 0.0
    %383 = vmatpush.msra.mxu0 0.0
    %384 = vmatpush.msra.mxu0 0.0
    %385 = vmatpush.msra.mxu0 0.0
    %386 = vmatpush.msra.mxu0 0.0
    %387 = vmatpush.msra.mxu0 0.0
    %388 = vmatpush.msra.mxu0 %v222
    %389 = vmatpush.msra.mxu0 %v221
    %390 = vmatpush.msra.mxu0 %v220
    %391 = vmatpush.msra.mxu0 %v219
    %392 = vmatmul.f32.gmra.mxu0 %v374
    %v393 = vpop.f32.mrf.mxu0
    %v394 = vadd.f32 0.0, %v393
    %395 = vdwg.mxu0
    %v397 = vrot.slane %v394, 6
    %v399 = vadd.f32 %v183, %v397
    %v400 = vrot.slane %v361, 6
    %401 = vrot.lane.b32.xlu0 %v400, 32
    %v402 = vpop.permute.xlu0 %401
    %v403 = vsel %vm158, %v402, 0
    %405 = vmatpush.msra.mxu0 0.0
    %406 = vmatpush.msra.mxu0 0.0
    %407 = vmatpush.msra.mxu0 0.0
    %408 = vmatpush.msra.mxu0 0.0
    %409 = vmatpush.msra.mxu0 0.0
    %410 = vmatpush.msra.mxu0 0.0
    %411 = vmatpush.msra.mxu0 0.0
    %412 = vmatpush.msra.mxu0 0.0
    %413 = vmatpush.msra.mxu0 0.0
    %414 = vmatpush.msra.mxu0 0.0
    %415 = vmatpush.msra.mxu0 0.0
    %416 = vmatpush.msra.mxu0 0.0
    %417 = vmatpush.msra.mxu0 %v226
    %418 = vmatpush.msra.mxu0 %v225
    %419 = vmatpush.msra.mxu0 %v224
    %420 = vmatpush.msra.mxu0 %v223
    %421 = vmatmul.f32.gmra.mxu0 %v403
    %v422 = vpop.f32.mrf.mxu0
    %v423 = vadd.f32 0.0, %v422
    %424 = vdwg.mxu0
    %v426 = vrot.slane %v423, 4
    %v428 = vadd.f32 %v217, %v426
    %v429 = vxor.u32 %v399, 2147483648
    %v430 = vmul.f32 %v429, 1.442695
    %v431 = vpow.pop %v430
    %v432 = vadd.f32 %v431, 1.0
    %v433 = vrcp.pop %v432
    %v434 = vmul.f32 %v432, %v433
    %v435 = vsub.f32 1.0, %v434
    %v436 = vmul.f32 %v433, %v435
    %v437 = vadd.f32 %v433, %v436
    %vm438 = vweird.f32 %v432
    %vm439 = vweird.f32 %v433
    %vm440 = vmor %vm438, %vm439
    %v441 = vsel %vm440, %v433, %v437
    %v442 = vand.u32 2147483647, %v432
    %vm443 = vcmp.eq.f32.partialorder %v442, 8.507059e+37
    %v444 = vand.u32 %v432, 2147483648
    %v445 = vor.u32 1.1754944e-38, %v444
    %v446 = vsel %vm443, %v445, %v441
    %v447 = vmul.f32 1.0, %v446
    %v448 = vtanh.pop %v399
    %v450 = vrot.slane %v314, 6
    %v452 = vmul.f32 %v447, %v450
    %454 = vrot.lane.b32.xlu0 %v448, 64
    %v455 = vpop.permute.xlu0 %454
    %v457 = vmul.f32 %v447, %v455
    %459 = vrot.lane.b32.xlu0 %v457, 32
    %v460 = vpop.permute.xlu0 %459
    %v462 = vadd.f32 %v452, %v460
    %v463 = vtanh.pop %v462
    %465 = vrot.lane.b32.xlu0 %v463, 64
    %v466 = vpop.permute.xlu0 %465
    %v468 = vmul.f32 %v447, %v466
    %v469 = vxor.u32 %v428, 2147483648
    %v470 = vmul.f32 %v469, 1.442695
    %v471 = vpow.pop %v470
    %v472 = vadd.f32 %v471, 1.0
    %v473 = vrcp.pop %v472
    %v474 = vmul.f32 %v472, %v473
    %v475 = vsub.f32 1.0, %v474
    %v476 = vmul.f32 %v473, %v475
    %v477 = vadd.f32 %v473, %v476
    %vm478 = vweird.f32 %v472
    %vm479 = vweird.f32 %v473
    %vm480 = vmor %vm478, %vm479
    %v481 = vsel %vm480, %v473, %v477
    %v482 = vand.u32 2147483647, %v472
    %vm483 = vcmp.eq.f32.partialorder %v482, 8.507059e+37
    %v484 = vand.u32 %v472, 2147483648
    %v485 = vor.u32 1.1754944e-38, %v484
    %v486 = vsel %vm483, %v485, %v481
    %v487 = vmul.f32 1.0, %v486
    %v488 = vtanh.pop %v428
    %v490 = vrot.slane %v355, 2
    %v492 = vmul.f32 %v487, %v490
    %494 = vrot.lane.b32.xlu0 %v488, 64
    %v495 = vpop.permute.xlu0 %494
    %v497 = vmul.f32 %v487, %v495
    %499 = vrot.lane.b32.xlu0 %v497, 32
    %v500 = vpop.permute.xlu0 %499
    %v502 = vadd.f32 %v492, %v500
    %v503 = vtanh.pop %v502
    %505 = vrot.lane.b32.xlu0 %v503, 64
    %v506 = vpop.permute.xlu0 %505
    %v508 = vmul.f32 %v487, %v506
    %510 = vrot.lane.b32.xlu0 %v468, 32
    %v511 = vpop.permute.xlu0 %510
    %vm513 = vcmask 257026
    %514 = vst.msk [vmem:[#allocation2] sm:$0xc] %vm513, %v511
    %516 = vrot.lane.b32.xlu0 %v508, 64
    %v517 = vpop.permute.xlu0 %516
    %vm519 = vcmask 521476
    %520 = vst.msk [vmem:[#allocation2 + $0x8] sm:$0x30] %vm519, %v517
    %v521 = vrot.slane %v468, 2
    %522 = vrot.lane.b32.xlu0 %v521, 32
    %v523 = vpop.permute.xlu0 %522
    %v524 = vsel %vm158, %v523, 0
    %526 = vmatpush.msra.mxu0 0.0
    %527 = vmatpush.msra.mxu0 0.0
    %528 = vmatpush.msra.mxu0 0.0
    %529 = vmatpush.msra.mxu0 0.0
    %530 = vmatpush.msra.mxu0 0.0
    %531 = vmatpush.msra.mxu0 0.0
    %532 = vmatpush.msra.mxu0 0.0
    %533 = vmatpush.msra.mxu0 0.0
    %534 = vmatpush.msra.mxu0 0.0
    %535 = vmatpush.msra.mxu0 0.0
    %536 = vmatpush.msra.mxu0 0.0
    %537 = vmatpush.msra.mxu0 0.0
    %538 = vmatpush.msra.mxu0 %v222
    %539 = vmatpush.msra.mxu0 %v221
    %540 = vmatpush.msra.mxu0 %v220
    %541 = vmatpush.msra.mxu0 %v219
    %542 = vmatmul.f32.gmra.mxu0 %v524
    %v543 = vpop.f32.mrf.mxu0
    %v544 = vadd.f32 0.0, %v543
    %545 = vdwg.mxu0
    %v547 = vrot.slane %v544, 4
    %v549 = vadd.f32 %v183, %v547
    %v550 = vrot.slane %v508, 4
    %551 = vrot.lane.b32.xlu0 %v550, 32
    %v552 = vpop.permute.xlu0 %551
    %v553 = vsel %vm158, %v552, 0
    %555 = vmatpush.msra.mxu0 0.0
    %556 = vmatpush.msra.mxu0 0.0
    %557 = vmatpush.msra.mxu0 0.0
    %558 = vmatpush.msra.mxu0 0.0
    %559 = vmatpush.msra.mxu0 0.0
    %560 = vmatpush.msra.mxu0 0.0
    %561 = vmatpush.msra.mxu0 0.0
    %562 = vmatpush.msra.mxu0 0.0
    %563 = vmatpush.msra.mxu0 0.0
    %564 = vmatpush.msra.mxu0 0.0
    %565 = vmatpush.msra.mxu0 0.0
    %566 = vmatpush.msra.mxu0 0.0
    %567 = vmatpush.msra.mxu0 %v226
    %568 = vmatpush.msra.mxu0 %v225
    %569 = vmatpush.msra.mxu0 %v224
    %570 = vmatpush.msra.mxu0 %v223
    %571 = vmatmul.f32.gmra.mxu0 %v553
    %v572 = vpop.f32.mrf.mxu0
    %v573 = vadd.f32 0.0, %v572
    %574 = vdwg.mxu0
    %v576 = vrot.slane %v573, 6
    %v578 = vadd.f32 %v217, %v576
    %v579 = vxor.u32 %v549, 2147483648
    %v580 = vmul.f32 %v579, 1.442695
    %v581 = vpow.pop %v580
    %v582 = vadd.f32 %v581, 1.0
    %v583 = vrcp.pop %v582
    %v584 = vmul.f32 %v582, %v583
    %v585 = vsub.f32 1.0, %v584
    %v586 = vmul.f32 %v583, %v585
    %v587 = vadd.f32 %v583, %v586
    %vm588 = vweird.f32 %v582
    %vm589 = vweird.f32 %v583
    %vm590 = vmor %vm588, %vm589
    %v591 = vsel %vm590, %v583, %v587
    %v592 = vand.u32 2147483647, %v582
    %vm593 = vcmp.eq.f32.partialorder %v592, 8.507059e+37
    %v594 = vand.u32 %v582, 2147483648
    %v595 = vor.u32 1.1754944e-38, %v594
    %v596 = vsel %vm593, %v595, %v591
    %v597 = vmul.f32 1.0, %v596
    %v598 = vtanh.pop %v549
    %v600 = vrot.slane %v462, 6
    %v602 = vmul.f32 %v597, %v600
    %604 = vrot.lane.b32.xlu0 %v598, 64
    %v605 = vpop.permute.xlu0 %604
    %v607 = vmul.f32 %v597, %v605
    %609 = vrot.lane.b32.xlu0 %v607, 32
    %v610 = vpop.permute.xlu0 %609
    %v612 = vadd.f32 %v602, %v610
    %v613 = vtanh.pop %v612
    %615 = vrot.lane.b32.xlu0 %v613, 64
    %v616 = vpop.permute.xlu0 %615
    %v618 = vmul.f32 %v597, %v616
    %v619 = vxor.u32 %v578, 2147483648
    %v620 = vmul.f32 %v619, 1.442695
    %v621 = vpow.pop %v620
    %v622 = vadd.f32 %v621, 1.0
    %v623 = vrcp.pop %v622
    %v624 = vmul.f32 %v622, %v623
    %v625 = vsub.f32 1.0, %v624
    %v626 = vmul.f32 %v623, %v625
    %v627 = vadd.f32 %v623, %v626
    %vm628 = vweird.f32 %v622
    %vm629 = vweird.f32 %v623
    %vm630 = vmor %vm628, %vm629
    %v631 = vsel %vm630, %v623, %v627
    %v632 = vand.u32 2147483647, %v622
    %vm633 = vcmp.eq.f32.partialorder %v632, 8.507059e+37
    %v634 = vand.u32 %v622, 2147483648
    %v635 = vor.u32 1.1754944e-38, %v634
    %v636 = vsel %vm633, %v635, %v631
    %v637 = vmul.f32 1.0, %v636
    %v638 = vtanh.pop %v578
    %v640 = vrot.slane %v502, 2
    %v642 = vmul.f32 %v637, %v640
    %644 = vrot.lane.b32.xlu0 %v638, 64
    %v645 = vpop.permute.xlu0 %644
    %v647 = vmul.f32 %v637, %v645
    %649 = vrot.lane.b32.xlu0 %v647, 32
    %v650 = vpop.permute.xlu0 %649
    %v652 = vadd.f32 %v642, %v650
    %v653 = vtanh.pop %v652
    %655 = vrot.lane.b32.xlu0 %v653, 64
    %v656 = vpop.permute.xlu0 %655
    %v658 = vmul.f32 %v637, %v656
    %660 = vrot.lane.b32.xlu0 %v618, 32
    %v661 = vpop.permute.xlu0 %660
    %vm663 = vcmask 259076
    %664 = vst.msk [vmem:[#allocation2] sm:$0x30] %vm663, %v661
    %666 = vrot.lane.b32.xlu0 %v658, 64
    %v667 = vpop.permute.xlu0 %666
    %vm669 = vcmask 519426
    %670 = vst.msk [vmem:[#allocation2 + $0x8] sm:$0xc] %vm669, %v667
    %v671 = vrot.slane %v618, 4
    %672 = vrot.lane.b32.xlu0 %v671, 32
    %v673 = vpop.permute.xlu0 %672
    %v674 = vsel %vm158, %v673, 0
    %676 = vmatpush.msra.mxu0 0.0
    %677 = vmatpush.msra.mxu0 0.0
    %678 = vmatpush.msra.mxu0 0.0
    %679 = vmatpush.msra.mxu0 0.0
    %680 = vmatpush.msra.mxu0 0.0
    %681 = vmatpush.msra.mxu0 0.0
    %682 = vmatpush.msra.mxu0 0.0
    %683 = vmatpush.msra.mxu0 0.0
    %684 = vmatpush.msra.mxu0 0.0
    %685 = vmatpush.msra.mxu0 0.0
    %686 = vmatpush.msra.mxu0 0.0
    %687 = vmatpush.msra.mxu0 0.0
    %688 = vmatpush.msra.mxu0 %v222
    %689 = vmatpush.msra.mxu0 %v221
    %690 = vmatpush.msra.mxu0 %v220
    %691 = vmatpush.msra.mxu0 %v219
    %692 = vmatmul.f32.gmra.mxu0 %v674
    %v693 = vpop.f32.mrf.mxu0
    %v694 = vadd.f32 0.0, %v693
    %695 = vdwg.mxu0
    %v697 = vrot.slane %v694, 2
    %v699 = vadd.f32 %v183, %v697
    %v700 = vrot.slane %v658, 2
    %701 = vrot.lane.b32.xlu0 %v700, 32
    %v702 = vpop.permute.xlu0 %701
    %v703 = vsel %vm158, %v702, 0
    %705 = vmatpush.msra.mxu0 0.0
    %706 = vmatpush.msra.mxu0 0.0
    %707 = vmatpush.msra.mxu0 0.0
    %708 = vmatpush.msra.mxu0 0.0
    %709 = vmatpush.msra.mxu0 0.0
    %710 = vmatpush.msra.mxu0 0.0
    %711 = vmatpush.msra.mxu0 0.0
    %712 = vmatpush.msra.mxu0 0.0
    %713 = vmatpush.msra.mxu0 0.0
    %714 = vmatpush.msra.mxu0 0.0
    %715 = vmatpush.msra.mxu0 0.0
    %716 = vmatpush.msra.mxu0 0.0
    %717 = vmatpush.msra.mxu0 %v226
    %718 = vmatpush.msra.mxu0 %v225
    %719 = vmatpush.msra.mxu0 %v224
    %720 = vmatpush.msra.mxu0 %v223
    %721 = vmatmul.f32.gmra.mxu0 %v703
    %v722 = vpop.f32.mrf.mxu0
    %v723 = vadd.f32 0.0, %v722
    %724 = vdwg.mxu0
    %v725 = vadd.f32 %v217, %v723
    %v726 = vxor.u32 %v699, 2147483648
    %v727 = vmul.f32 %v726, 1.442695
    %v728 = vpow.pop %v727
    %v729 = vadd.f32 %v728, 1.0
    %v730 = vrcp.pop %v729
    %v731 = vmul.f32 %v729, %v730
    %v732 = vsub.f32 1.0, %v731
    %v733 = vmul.f32 %v730, %v732
    %v734 = vadd.f32 %v730, %v733
    %vm735 = vweird.f32 %v729
    %vm736 = vweird.f32 %v730
    %vm737 = vmor %vm735, %vm736
    %v738 = vsel %vm737, %v730, %v734
    %v739 = vand.u32 2147483647, %v729
    %vm740 = vcmp.eq.f32.partialorder %v739, 8.507059e+37
    %v741 = vand.u32 %v729, 2147483648
    %v742 = vor.u32 1.1754944e-38, %v741
    %v743 = vsel %vm740, %v742, %v738
    %v744 = vmul.f32 1.0, %v743
    %v745 = vtanh.pop %v699
    %v747 = vrot.slane %v612, 6
    %v749 = vmul.f32 %v744, %v747
    %751 = vrot.lane.b32.xlu0 %v745, 64
    %v752 = vpop.permute.xlu0 %751
    %v754 = vmul.f32 %v744, %v752
    %756 = vrot.lane.b32.xlu0 %v754, 32
    %v757 = vpop.permute.xlu0 %756
    %v759 = vadd.f32 %v749, %v757
    %v760 = vtanh.pop %v759
    %762 = vrot.lane.b32.xlu0 %v760, 64
    %v763 = vpop.permute.xlu0 %762
    %v765 = vmul.f32 %v744, %v763
    %v766 = vxor.u32 %v725, 2147483648
    %v767 = vmul.f32 %v766, 1.442695
    %v768 = vpow.pop %v767
    %v769 = vadd.f32 %v768, 1.0
    %v770 = vrcp.pop %v769
    %v771 = vmul.f32 %v769, %v770
    %v772 = vsub.f32 1.0, %v771
    %v773 = vmul.f32 %v770, %v772
    %v774 = vadd.f32 %v770, %v773
    %vm775 = vweird.f32 %v769
    %vm776 = vweird.f32 %v770
    %vm777 = vmor %vm775, %vm776
    %v778 = vsel %vm777, %v770, %v774
    %v779 = vand.u32 2147483647, %v769
    %vm780 = vcmp.eq.f32.partialorder %v779, 8.507059e+37
    %v781 = vand.u32 %v769, 2147483648
    %v782 = vor.u32 1.1754944e-38, %v781
    %v783 = vsel %vm780, %v782, %v778
    %v784 = vmul.f32 1.0, %v783
    %v785 = vtanh.pop %v725
    %v787 = vrot.slane %v652, 2
    %v789 = vmul.f32 %v784, %v787
    %791 = vrot.lane.b32.xlu0 %v785, 64
    %v792 = vpop.permute.xlu0 %791
    %v794 = vmul.f32 %v784, %v792
    %796 = vrot.lane.b32.xlu0 %v794, 32
    %v797 = vpop.permute.xlu0 %796
    %v799 = vadd.f32 %v789, %v797
    %v800 = vtanh.pop %v799
    %802 = vrot.lane.b32.xlu0 %v800, 64
    %v803 = vpop.permute.xlu0 %802
    %v805 = vmul.f32 %v784, %v803
    %807 = vrot.lane.b32.xlu0 %v765, 32
    %v808 = vpop.permute.xlu0 %807
    %vm810 = vcmask 261126
    %811 = vst.msk [vmem:[#allocation2] sm:$0xc0] %vm810, %v808
    %813 = vrot.lane.b32.xlu0 %v805, 64
    %v814 = vpop.permute.xlu0 %813
    %vm816 = vcmask 517376
    %817 = vst.msk [vmem:[#allocation2 + $0x8] sm:$0x3] %vm816, %v814
    %v818 = vrot.slane %v765, 6
    %819 = vrot.lane.b32.xlu0 %v818, 32
    %v820 = vpop.permute.xlu0 %819
    %v821 = vsel %vm158, %v820, 0
    %823 = vmatpush.msra.mxu0 0.0
    %824 = vmatpush.msra.mxu0 0.0
    %825 = vmatpush.msra.mxu0 0.0
    %826 = vmatpush.msra.mxu0 0.0
    %827 = vmatpush.msra.mxu0 0.0
    %828 = vmatpush.msra.mxu0 0.0
    %829 = vmatpush.msra.mxu0 0.0
    %830 = vmatpush.msra.mxu0 0.0
    %831 = vmatpush.msra.mxu0 0.0
    %832 = vmatpush.msra.mxu0 0.0
    %833 = vmatpush.msra.mxu0 0.0
    %834 = vmatpush.msra.mxu0 0.0
    %835 = vmatpush.msra.mxu0 %v222
    %836 = vmatpush.msra.mxu0 %v221
    %837 = vmatpush.msra.mxu0 %v220
    %838 = vmatpush.msra.mxu0 %v219
    %839 = vmatmul.f32.gmra.mxu0 %v821
    %v840 = vpop.f32.mrf.mxu0
    %v841 = vadd.f32 0.0, %v840
    %842 = vdwg.mxu0
    %v843 = vadd.f32 %v186, %v841
    %844 = vrot.lane.b32.xlu0 %v805, 32
    %v845 = vpop.permute.xlu0 %844
    %v846 = vsel %vm158, %v845, 0
    %848 = vmatpush.msra.mxu0 0.0
    %849 = vmatpush.msra.mxu0 0.0
    %850 = vmatpush.msra.mxu0 0.0
    %851 = vmatpush.msra.mxu0 0.0
    %852 = vmatpush.msra.mxu0 0.0
    %853 = vmatpush.msra.mxu0 0.0
    %854 = vmatpush.msra.mxu0 0.0
    %855 = vmatpush.msra.mxu0 0.0
    %856 = vmatpush.msra.mxu0 0.0
    %857 = vmatpush.msra.mxu0 0.0
    %858 = vmatpush.msra.mxu0 0.0
    %859 = vmatpush.msra.mxu0 0.0
    %860 = vmatpush.msra.mxu0 %v226
    %861 = vmatpush.msra.mxu0 %v225
    %862 = vmatpush.msra.mxu0 %v224
    %863 = vmatpush.msra.mxu0 %v223
    %864 = vmatmul.f32.gmra.mxu0 %v846
    %v865 = vpop.f32.mrf.mxu0
    %v866 = vadd.f32 0.0, %v865
    %867 = vdwg.mxu0
    %v869 = vrot.slane %v866, 2
    %v871 = vadd.f32 %v214, %v869
    %v872 = vxor.u32 %v843, 2147483648
    %v873 = vmul.f32 %v872, 1.442695
    %v874 = vpow.pop %v873
    %v875 = vadd.f32 %v874, 1.0
    %v876 = vrcp.pop %v875
    %v877 = vmul.f32 %v875, %v876
    %v878 = vsub.f32 1.0, %v877
    %v879 = vmul.f32 %v876, %v878
    %v880 = vadd.f32 %v876, %v879
    %vm881 = vweird.f32 %v875
    %vm882 = vweird.f32 %v876
    %vm883 = vmor %vm881, %vm882
    %v884 = vsel %vm883, %v876, %v880
    %v885 = vand.u32 2147483647, %v875
    %vm886 = vcmp.eq.f32.partialorder %v885, 8.507059e+37
    %v887 = vand.u32 %v875, 2147483648
    %v888 = vor.u32 1.1754944e-38, %v887
    %v889 = vsel %vm886, %v888, %v884
    %v890 = vmul.f32 1.0, %v889
    %v891 = vtanh.pop %v843
    %v893 = vrot.slane %v759, 6
    %v895 = vmul.f32 %v890, %v893
    %897 = vrot.lane.b32.xlu0 %v891, 64
    %v898 = vpop.permute.xlu0 %897
    %v900 = vmul.f32 %v890, %v898
    %902 = vrot.lane.b32.xlu0 %v900, 32
    %v903 = vpop.permute.xlu0 %902
    %v905 = vadd.f32 %v895, %v903
    %v906 = vtanh.pop %v905
    %908 = vrot.lane.b32.xlu0 %v906, 64
    %v909 = vpop.permute.xlu0 %908
    %v911 = vmul.f32 %v890, %v909
    %v912 = vxor.u32 %v871, 2147483648
    %v913 = vmul.f32 %v912, 1.442695
    %v914 = vpow.pop %v913
    %v915 = vadd.f32 %v914, 1.0
    %v916 = vrcp.pop %v915
    %v917 = vmul.f32 %v915, %v916
    %v918 = vsub.f32 1.0, %v917
    %v919 = vmul.f32 %v916, %v918
    %v920 = vadd.f32 %v916, %v919
    %vm921 = vweird.f32 %v915
    %vm922 = vweird.f32 %v916
    %vm923 = vmor %vm921, %vm922
    %v924 = vsel %vm923, %v916, %v920
    %v925 = vand.u32 2147483647, %v915
    %vm926 = vcmp.eq.f32.partialorder %v925, 8.507059e+37
    %v927 = vand.u32 %v915, 2147483648
    %v928 = vor.u32 1.1754944e-38, %v927
    %v929 = vsel %vm926, %v928, %v924
    %v930 = vmul.f32 1.0, %v929
    %v931 = vtanh.pop %v871
    %v933 = vrot.slane %v799, 2
    %v935 = vmul.f32 %v930, %v933
    %937 = vrot.lane.b32.xlu0 %v931, 64
    %v938 = vpop.permute.xlu0 %937
    %v940 = vmul.f32 %v930, %v938
    %942 = vrot.lane.b32.xlu0 %v940, 32
    %v943 = vpop.permute.xlu0 %942
    %v945 = vadd.f32 %v935, %v943
    %v946 = vtanh.pop %v945
    %948 = vrot.lane.b32.xlu0 %v946, 64
    %v949 = vpop.permute.xlu0 %948
    %v951 = vmul.f32 %v930, %v949
    %953 = vrot.lane.b32.xlu0 %v911, 32
    %v954 = vpop.permute.xlu0 %953
    %956 = vst.msk [vmem:[#allocation2 + $0x8] sm:$0x3] %vm366, %v954
    %958 = vrot.lane.b32.xlu0 %v951, 64
    %v959 = vpop.permute.xlu0 %958
    %961 = vst.msk [vmem:[#allocation2] sm:$0xc0] %vm372, %v959
    %v962 = vsel %vm158, %v954, 0
    %964 = vmatpush.msra.mxu0 0.0
    %965 = vmatpush.msra.mxu0 0.0
    %966 = vmatpush.msra.mxu0 0.0
    %967 = vmatpush.msra.mxu0 0.0
    %968 = vmatpush.msra.mxu0 0.0
    %969 = vmatpush.msra.mxu0 0.0
    %970 = vmatpush.msra.mxu0 0.0
    %971 = vmatpush.msra.mxu0 0.0
    %972 = vmatpush.msra.mxu0 0.0
    %973 = vmatpush.msra.mxu0 0.0
    %974 = vmatpush.msra.mxu0 0.0
    %975 = vmatpush.msra.mxu0 0.0
    %976 = vmatpush.msra.mxu0 %v222
    %977 = vmatpush.msra.mxu0 %v221
    %978 = vmatpush.msra.mxu0 %v220
    %979 = vmatpush.msra.mxu0 %v219
    %980 = vmatmul.f32.gmra.mxu0 %v962
    %v981 = vpop.f32.mrf.mxu0
    %v982 = vadd.f32 0.0, %v981
    %983 = vdwg.mxu0
    %v985 = vrot.slane %v982, 6
    %v987 = vadd.f32 %v186, %v985
    %v988 = vrot.slane %v951, 6
    %989 = vrot.lane.b32.xlu0 %v988, 32
    %v990 = vpop.permute.xlu0 %989
    %v991 = vsel %vm158, %v990, 0
    %993 = vmatpush.msra.mxu0 0.0
    %994 = vmatpush.msra.mxu0 0.0
    %995 = vmatpush.msra.mxu0 0.0
    %996 = vmatpush.msra.mxu0 0.0
    %997 = vmatpush.msra.mxu0 0.0
    %998 = vmatpush.msra.mxu0 0.0
    %999 = vmatpush.msra.mxu0 0.0
    %1000 = vmatpush.msra.mxu0 0.0
    %1001 = vmatpush.msra.mxu0 0.0
    %1002 = vmatpush.msra.mxu0 0.0
    %1003 = vmatpush.msra.mxu0 0.0
    %1004 = vmatpush.msra.mxu0 0.0
    %1005 = vmatpush.msra.mxu0 %v226
    %1006 = vmatpush.msra.mxu0 %v225
    %1007 = vmatpush.msra.mxu0 %v224
    %1008 = vmatpush.msra.mxu0 %v223
    %1009 = vmatmul.f32.gmra.mxu0 %v991
    %v1010 = vpop.f32.mrf.mxu0
    %v1011 = vadd.f32 0.0, %v1010
    %1012 = vdwg.mxu0
    %v1014 = vrot.slane %v1011, 4
    %v1016 = vadd.f32 %v214, %v1014
    %v1017 = vxor.u32 %v987, 2147483648
    %v1018 = vmul.f32 %v1017, 1.442695
    %v1019 = vpow.pop %v1018
    %v1020 = vadd.f32 %v1019, 1.0
    %v1021 = vrcp.pop %v1020
    %v1022 = vmul.f32 %v1020, %v1021
    %v1023 = vsub.f32 1.0, %v1022
    %v1024 = vmul.f32 %v1021, %v1023
    %v1025 = vadd.f32 %v1021, %v1024
    %vm1026 = vweird.f32 %v1020
    %vm1027 = vweird.f32 %v1021
    %vm1028 = vmor %vm1026, %vm1027
    %v1029 = vsel %vm1028, %v1021, %v1025
    %v1030 = vand.u32 2147483647, %v1020
    %vm1031 = vcmp.eq.f32.partialorder %v1030, 8.507059e+37
    %v1032 = vand.u32 %v1020, 2147483648
    %v1033 = vor.u32 1.1754944e-38, %v1032
    %v1034 = vsel %vm1031, %v1033, %v1029
    %v1035 = vmul.f32 1.0, %v1034
    %v1036 = vtanh.pop %v987
    %v1038 = vrot.slane %v905, 6
    %v1040 = vmul.f32 %v1035, %v1038
    %1042 = vrot.lane.b32.xlu0 %v1036, 64
    %v1043 = vpop.permute.xlu0 %1042
    %v1045 = vmul.f32 %v1035, %v1043
    %1047 = vrot.lane.b32.xlu0 %v1045, 32
    %v1048 = vpop.permute.xlu0 %1047
    %v1050 = vadd.f32 %v1040, %v1048
    %v1051 = vtanh.pop %v1050
    %1053 = vrot.lane.b32.xlu0 %v1051, 64
    %v1054 = vpop.permute.xlu0 %1053
    %v1056 = vmul.f32 %v1035, %v1054
    %v1057 = vxor.u32 %v1016, 2147483648
    %v1058 = vmul.f32 %v1057, 1.442695
    %v1059 = vpow.pop %v1058
    %v1060 = vadd.f32 %v1059, 1.0
    %v1061 = vrcp.pop %v1060
    %v1062 = vmul.f32 %v1060, %v1061
    %v1063 = vsub.f32 1.0, %v1062
    %v1064 = vmul.f32 %v1061, %v1063
    %v1065 = vadd.f32 %v1061, %v1064
    %vm1066 = vweird.f32 %v1060
    %vm1067 = vweird.f32 %v1061
    %vm1068 = vmor %vm1066, %vm1067
    %v1069 = vsel %vm1068, %v1061, %v1065
    %v1070 = vand.u32 2147483647, %v1060
    %vm1071 = vcmp.eq.f32.partialorder %v1070, 8.507059e+37
    %v1072 = vand.u32 %v1060, 2147483648
    %v1073 = vor.u32 1.1754944e-38, %v1072
    %v1074 = vsel %vm1071, %v1073, %v1069
    %v1075 = vmul.f32 1.0, %v1074
    %v1076 = vtanh.pop %v1016
    %v1078 = vrot.slane %v945, 2
    %v1080 = vmul.f32 %v1075, %v1078
    %1082 = vrot.lane.b32.xlu0 %v1076, 64
    %v1083 = vpop.permute.xlu0 %1082
    %v1085 = vmul.f32 %v1075, %v1083
    %1087 = vrot.lane.b32.xlu0 %v1085, 32
    %v1088 = vpop.permute.xlu0 %1087
    %v1090 = vadd.f32 %v1080, %v1088
    %v1091 = vtanh.pop %v1090
    %1093 = vrot.lane.b32.xlu0 %v1091, 64
    %v1094 = vpop.permute.xlu0 %1093
    %v1096 = vmul.f32 %v1075, %v1094
    %1098 = vrot.lane.b32.xlu0 %v1056, 32
    %v1099 = vpop.permute.xlu0 %1098
    %1101 = vst.msk [vmem:[#allocation2 + $0x8] sm:$0xc] %vm513, %v1099
    %1103 = vrot.lane.b32.xlu0 %v1096, 64
    %v1104 = vpop.permute.xlu0 %1103
    %1106 = vst.msk [vmem:[#allocation2] sm:$0x30] %vm519, %v1104
    %v1107 = vrot.slane %v1056, 2
    %1108 = vrot.lane.b32.xlu0 %v1107, 32
    %v1109 = vpop.permute.xlu0 %1108
    %v1110 = vsel %vm158, %v1109, 0
    %1112 = vmatpush.msra.mxu0 0.0
    %1113 = vmatpush.msra.mxu0 0.0
    %1114 = vmatpush.msra.mxu0 0.0
    %1115 = vmatpush.msra.mxu0 0.0
    %1116 = vmatpush.msra.mxu0 0.0
    %1117 = vmatpush.msra.mxu0 0.0
    %1118 = vmatpush.msra.mxu0 0.0
    %1119 = vmatpush.msra.mxu0 0.0
    %1120 = vmatpush.msra.mxu0 0.0
    %1121 = vmatpush.msra.mxu0 0.0
    %1122 = vmatpush.msra.mxu0 0.0
    %1123 = vmatpush.msra.mxu0 0.0
    %1124 = vmatpush.msra.mxu0 %v222
    %1125 = vmatpush.msra.mxu0 %v221
    %1126 = vmatpush.msra.mxu0 %v220
    %1127 = vmatpush.msra.mxu0 %v219
    %1128 = vmatmul.f32.gmra.mxu0 %v1110
    %v1129 = vpop.f32.mrf.mxu0
    %v1130 = vadd.f32 0.0, %v1129
    %1131 = vdwg.mxu0
    %v1133 = vrot.slane %v1130, 4
    %v1135 = vadd.f32 %v186, %v1133
    %v1136 = vrot.slane %v1096, 4
    %1137 = vrot.lane.b32.xlu0 %v1136, 32
    %v1138 = vpop.permute.xlu0 %1137
    %v1139 = vsel %vm158, %v1138, 0
    %1141 = vmatpush.msra.mxu0 0.0
    %1142 = vmatpush.msra.mxu0 0.0
    %1143 = vmatpush.msra.mxu0 0.0
    %1144 = vmatpush.msra.mxu0 0.0
    %1145 = vmatpush.msra.mxu0 0.0
    %1146 = vmatpush.msra.mxu0 0.0
    %1147 = vmatpush.msra.mxu0 0.0
    %1148 = vmatpush.msra.mxu0 0.0
    %1149 = vmatpush.msra.mxu0 0.0
    %1150 = vmatpush.msra.mxu0 0.0
    %1151 = vmatpush.msra.mxu0 0.0
    %1152 = vmatpush.msra.mxu0 0.0
    %1153 = vmatpush.msra.mxu0 %v226
    %1154 = vmatpush.msra.mxu0 %v225
    %1155 = vmatpush.msra.mxu0 %v224
    %1156 = vmatpush.msra.mxu0 %v223
    %1157 = vmatmul.f32.gmra.mxu0 %v1139
    %v1158 = vpop.f32.mrf.mxu0
    %v1159 = vadd.f32 0.0, %v1158
    %1160 = vdwg.mxu0
    %v1162 = vrot.slane %v1159, 6
    %v1164 = vadd.f32 %v214, %v1162
    %v1165 = vxor.u32 %v1135, 2147483648
    %v1166 = vmul.f32 %v1165, 1.442695
    %v1167 = vpow.pop %v1166
    %v1168 = vadd.f32 %v1167, 1.0
    %v1169 = vrcp.pop %v1168
    %v1170 = vmul.f32 %v1168, %v1169
    %v1171 = vsub.f32 1.0, %v1170
    %v1172 = vmul.f32 %v1169, %v1171
    %v1173 = vadd.f32 %v1169, %v1172
    %vm1174 = vweird.f32 %v1168
    %vm1175 = vweird.f32 %v1169
    %vm1176 = vmor %vm1174, %vm1175
    %v1177 = vsel %vm1176, %v1169, %v1173
    %v1178 = vand.u32 2147483647, %v1168
    %vm1179 = vcmp.eq.f32.partialorder %v1178, 8.507059e+37
    %v1180 = vand.u32 %v1168, 2147483648
    %v1181 = vor.u32 1.1754944e-38, %v1180
    %v1182 = vsel %vm1179, %v1181, %v1177
    %v1183 = vmul.f32 1.0, %v1182
    %v1184 = vtanh.pop %v1135
    %v1186 = vrot.slane %v1050, 6
    %v1188 = vmul.f32 %v1183, %v1186
    %1190 = vrot.lane.b32.xlu0 %v1184, 64
    %v1191 = vpop.permute.xlu0 %1190
    %v1193 = vmul.f32 %v1183, %v1191
    %1195 = vrot.lane.b32.xlu0 %v1193, 32
    %v1196 = vpop.permute.xlu0 %1195
    %v1198 = vadd.f32 %v1188, %v1196
    %v1199 = vtanh.pop %v1198
    %1201 = vrot.lane.b32.xlu0 %v1199, 64
    %v1202 = vpop.permute.xlu0 %1201
    %v1204 = vmul.f32 %v1183, %v1202
    %v1205 = vxor.u32 %v1164, 2147483648
    %v1206 = vmul.f32 %v1205, 1.442695
    %v1207 = vpow.pop %v1206
    %v1208 = vadd.f32 %v1207, 1.0
    %v1209 = vrcp.pop %v1208
    %v1210 = vmul.f32 %v1208, %v1209
    %v1211 = vsub.f32 1.0, %v1210
    %v1212 = vmul.f32 %v1209, %v1211
    %v1213 = vadd.f32 %v1209, %v1212
    %vm1214 = vweird.f32 %v1208
    %vm1215 = vweird.f32 %v1209
    %vm1216 = vmor %vm1214, %vm1215
    %v1217 = vsel %vm1216, %v1209, %v1213
    %v1218 = vand.u32 2147483647, %v1208
    %vm1219 = vcmp.eq.f32.partialorder %v1218, 8.507059e+37
    %v1220 = vand.u32 %v1208, 2147483648
    %v1221 = vor.u32 1.1754944e-38, %v1220
    %v1222 = vsel %vm1219, %v1221, %v1217
    %v1223 = vmul.f32 1.0, %v1222
    %v1224 = vtanh.pop %v1164
    %v1226 = vrot.slane %v1090, 2
    %v1228 = vmul.f32 %v1223, %v1226
    %1230 = vrot.lane.b32.xlu0 %v1224, 64
    %v1231 = vpop.permute.xlu0 %1230
    %v1233 = vmul.f32 %v1223, %v1231
    %1235 = vrot.lane.b32.xlu0 %v1233, 32
    %v1236 = vpop.permute.xlu0 %1235
    %v1238 = vadd.f32 %v1228, %v1236
    %v1239 = vtanh.pop %v1238
    %1241 = vrot.lane.b32.xlu0 %v1239, 64
    %v1242 = vpop.permute.xlu0 %1241
    %v1244 = vmul.f32 %v1223, %v1242
    %1246 = vrot.lane.b32.xlu0 %v1204, 32
    %v1247 = vpop.permute.xlu0 %1246
    %1249 = vst.msk [vmem:[#allocation2 + $0x8] sm:$0x30] %vm663, %v1247
    %1251 = vrot.lane.b32.xlu0 %v1244, 64
    %v1252 = vpop.permute.xlu0 %1251
    %1254 = vst.msk [vmem:[#allocation2] sm:$0xc] %vm669, %v1252
    %v1255 = vrot.slane %v1204, 4
    %1256 = vrot.lane.b32.xlu0 %v1255, 32
    %v1257 = vpop.permute.xlu0 %1256
    %v1258 = vsel %vm158, %v1257, 0
    %1260 = vmatpush.msra.mxu0 0.0
    %1261 = vmatpush.msra.mxu0 0.0
    %1262 = vmatpush.msra.mxu0 0.0
    %1263 = vmatpush.msra.mxu0 0.0
    %1264 = vmatpush.msra.mxu0 0.0
    %1265 = vmatpush.msra.mxu0 0.0
    %1266 = vmatpush.msra.mxu0 0.0
    %1267 = vmatpush.msra.mxu0 0.0
    %1268 = vmatpush.msra.mxu0 0.0
    %1269 = vmatpush.msra.mxu0 0.0
    %1270 = vmatpush.msra.mxu0 0.0
    %1271 = vmatpush.msra.mxu0 0.0
    %1272 = vmatpush.msra.mxu0 %v222
    %1273 = vmatpush.msra.mxu0 %v221
    %1274 = vmatpush.msra.mxu0 %v220
    %1275 = vmatpush.msra.mxu0 %v219
    %1276 = vmatmul.f32.gmra.mxu0 %v1258
    %v1277 = vpop.f32.mrf.mxu0
    %v1278 = vadd.f32 0.0, %v1277
    %1279 = vdwg.mxu0
    %v1281 = vrot.slane %v1278, 2
    %v1283 = vadd.f32 %v186, %v1281
    %v1284 = vrot.slane %v1244, 2
    %1285 = vrot.lane.b32.xlu0 %v1284, 32
    %v1286 = vpop.permute.xlu0 %1285
    %v1287 = vsel %vm158, %v1286, 0
    %1289 = vmatpush.msra.mxu0 0.0
    %1290 = vmatpush.msra.mxu0 0.0
    %1291 = vmatpush.msra.mxu0 0.0
    %1292 = vmatpush.msra.mxu0 0.0
    %1293 = vmatpush.msra.mxu0 0.0
    %1294 = vmatpush.msra.mxu0 0.0
    %1295 = vmatpush.msra.mxu0 0.0
    %1296 = vmatpush.msra.mxu0 0.0
    %1297 = vmatpush.msra.mxu0 0.0
    %1298 = vmatpush.msra.mxu0 0.0
    %1299 = vmatpush.msra.mxu0 0.0
    %1300 = vmatpush.msra.mxu0 0.0
    %1301 = vmatpush.msra.mxu0 %v226
    %1302 = vmatpush.msra.mxu0 %v225
    %1303 = vmatpush.msra.mxu0 %v224
    %1304 = vmatpush.msra.mxu0 %v223
    %1305 = vmatmul.f32.gmra.mxu0 %v1287
    %v1306 = vpop.f32.mrf.mxu0
    %v1307 = vadd.f32 0.0, %v1306
    %1308 = vdwg.mxu0
    %v1309 = vadd.f32 %v214, %v1307
    %v1310 = vxor.u32 %v1283, 2147483648
    %v1311 = vmul.f32 %v1310, 1.442695
    %v1312 = vpow.pop %v1311
    %v1313 = vadd.f32 %v1312, 1.0
    %v1314 = vrcp.pop %v1313
    %v1315 = vmul.f32 %v1313, %v1314
    %v1316 = vsub.f32 1.0, %v1315
    %v1317 = vmul.f32 %v1314, %v1316
    %v1318 = vadd.f32 %v1314, %v1317
    %vm1319 = vweird.f32 %v1313
    %vm1320 = vweird.f32 %v1314
    %vm1321 = vmor %vm1319, %vm1320
    %v1322 = vsel %vm1321, %v1314, %v1318
    %v1323 = vand.u32 2147483647, %v1313
    %vm1324 = vcmp.eq.f32.partialorder %v1323, 8.507059e+37
    %v1325 = vand.u32 %v1313, 2147483648
    %v1326 = vor.u32 1.1754944e-38, %v1325
    %v1327 = vsel %vm1324, %v1326, %v1322
    %v1328 = vmul.f32 1.0, %v1327
    %v1329 = vtanh.pop %v1283
    %v1331 = vrot.slane %v1198, 6
    %v1333 = vmul.f32 %v1328, %v1331
    %1335 = vrot.lane.b32.xlu0 %v1329, 64
    %v1336 = vpop.permute.xlu0 %1335
    %v1338 = vmul.f32 %v1328, %v1336
    %1340 = vrot.lane.b32.xlu0 %v1338, 32
    %v1341 = vpop.permute.xlu0 %1340
    %v1343 = vadd.f32 %v1333, %v1341
    %v1344 = vtanh.pop %v1343
    %1346 = vrot.lane.b32.xlu0 %v1344, 64
    %v1347 = vpop.permute.xlu0 %1346
    %v1349 = vmul.f32 %v1328, %v1347
    %v1350 = vxor.u32 %v1309, 2147483648
    %v1351 = vmul.f32 %v1350, 1.442695
    %v1352 = vpow.pop %v1351
    %v1353 = vadd.f32 %v1352, 1.0
    %v1354 = vrcp.pop %v1353
    %v1355 = vmul.f32 %v1353, %v1354
    %v1356 = vsub.f32 1.0, %v1355
    %v1357 = vmul.f32 %v1354, %v1356
    %v1358 = vadd.f32 %v1354, %v1357
    %vm1359 = vweird.f32 %v1353
    %vm1360 = vweird.f32 %v1354
    %vm1361 = vmor %vm1359, %vm1360
    %v1362 = vsel %vm1361, %v1354, %v1358
    %v1363 = vand.u32 2147483647, %v1353
    %vm1364 = vcmp.eq.f32.partialorder %v1363, 8.507059e+37
    %v1365 = vand.u32 %v1353, 2147483648
    %v1366 = vor.u32 1.1754944e-38, %v1365
    %v1367 = vsel %vm1364, %v1366, %v1362
    %v1368 = vmul.f32 1.0, %v1367
    %v1369 = vtanh.pop %v1309
    %v1371 = vrot.slane %v1238, 2
    %v1373 = vmul.f32 %v1368, %v1371
    %1375 = vrot.lane.b32.xlu0 %v1369, 64
    %v1376 = vpop.permute.xlu0 %1375
    %v1378 = vmul.f32 %v1368, %v1376
    %1380 = vrot.lane.b32.xlu0 %v1378, 32
    %v1381 = vpop.permute.xlu0 %1380
    %v1383 = vadd.f32 %v1373, %v1381
    %v1384 = vtanh.pop %v1383
    %1386 = vrot.lane.b32.xlu0 %v1384, 64
    %v1387 = vpop.permute.xlu0 %1386
    %v1389 = vmul.f32 %v1368, %v1387
    %1391 = vrot.lane.b32.xlu0 %v1349, 32
    %v1392 = vpop.permute.xlu0 %1391
    %1394 = vst.msk [vmem:[#allocation2 + $0x8] sm:$0xc0] %vm810, %v1392
    %1396 = vrot.lane.b32.xlu0 %v1389, 64
    %v1397 = vpop.permute.xlu0 %1396
    %1399 = vst.msk [vmem:[#allocation2] sm:$0x3] %vm816, %v1397
    %v1400 = vld [vmem:[#allocation2] sm:$0xff]
    %v1401 = vld [vmem:[#allocation2 + $0x8] sm:$0xff]
    %v1402 = vld [vmem:[#allocation12] sm:$0xff]
    %v1403 = vld [vmem:[#allocation12 + $0x8] sm:$0xff]
    %vm1404 = vcmask 523264
    %v1406 = vsel %vm1404, %v1400, 0
    %v1409 = vsel %vm1404, %v1401, 0
    %1411 = vmatpush.xpose.msra.mxu0 0.0
    %1412 = vmatpush.xpose.msra.mxu0 0.0
    %1413 = vmatpush.xpose.msra.mxu0 0.0
    %1414 = vmatpush.xpose.msra.mxu0 0.0
    %1415 = vmatpush.xpose.msra.mxu0 0.0
    %1416 = vmatpush.xpose.msra.mxu0 0.0
    %1417 = vmatpush.xpose.msra.mxu0 0.0
    %1418 = vmatpush.xpose.msra.mxu0 0.0
    %1419 = vmatpush.xpose.msra.mxu0 0.0
    %1420 = vmatpush.xpose.msra.mxu0 0.0
    %1421 = vmatpush.xpose.msra.mxu0 0.0
    %1422 = vmatpush.xpose.msra.mxu0 0.0
    %1423 = vmatpush.xpose.msra.mxu0 0.0
    %1424 = vmatpush.xpose.msra.mxu0 0.0
    %1425 = vmatpush.xpose.msra.mxu0 %v1409
    %1426 = vmatpush.xpose.msra.mxu0 %v1406
    %1427 = vmatmul.f32.gmra.mxu0 %v1406
    %v1428 = vpop.f32.mrf.mxu0
    %v1429 = vadd.f32 %v1402, %v1428
    %1430 = vmatmul.f32.gmra.mxu0 %v1409
    %v1431 = vpop.f32.mrf.mxu0
    %v1432 = vadd.f32 %v1403, %v1431
    %1433 = vdwg.mxu0
    %vm1434 = vcmask 130048
    %v1435 = vsel %vm1434, %v1429, -inf
    %1436 = vmax.xlane.f32.xlu0 %v1435
    %v1437 = vpop.xlane.xlu0 %1436
    %v1438 = vsel %vm1434, %v1432, -inf
    %1439 = vmax.xlane.f32.xlu0 %v1438
    %v1440 = vpop.xlane.xlu0 %1439
    %v1441 = vsub.f32 %v1429, %v1437
    %v1442 = vsub.f32 %v1432, %v1440
    %v1443 = vmul.f32 %v1441, 1.442695
    %v1444 = vpow.pop %v1443
    %v1445 = vmul.f32 %v1442, 1.442695
    %v1446 = vpow.pop %v1445
    %v1447 = vsel %vm1434, %v1444, 0.0
    %1448 = vadd.xlane.f32.xlu0 %v1447
    %v1449 = vpop.xlane.xlu0 %1448
    %v1450 = vsel %vm1434, %v1446, 0.0
    %1451 = vadd.xlane.f32.xlu0 %v1450
    %v1452 = vpop.xlane.xlu0 %1451
    %v1453 = vrcp.pop %v1449
    %v1454 = vrcp.pop %v1452
    %v1455 = vmul.f32 %v1444, %v1453
    %v1456 = vmul.f32 %v1446, %v1454
    %v1458 = vsel %vm1434, %v1455, 0
    %v1461 = vsel %vm1434, %v1456, 0
    %1463 = vmatpush.msra.mxu0 0.0
    %1464 = vmatpush.msra.mxu0 0.0
    %1465 = vmatpush.msra.mxu0 0.0
    %1466 = vmatpush.msra.mxu0 0.0
    %1467 = vmatpush.msra.mxu0 0.0
    %1468 = vmatpush.msra.mxu0 0.0
    %1469 = vmatpush.msra.mxu0 0.0
    %1470 = vmatpush.msra.mxu0 0.0
    %1471 = vmatpush.msra.mxu0 0.0
    %1472 = vmatpush.msra.mxu0 0.0
    %1473 = vmatpush.msra.mxu0 0.0
    %1474 = vmatpush.msra.mxu0 0.0
    %1475 = vmatpush.msra.mxu0 0.0
    %1476 = vmatpush.msra.mxu0 0.0
    %1477 = vmatpush.msra.mxu0 %v149
    %1478 = vmatpush.msra.mxu0 %v148
    %1479 = vmatmul.f32.gmra.mxu0 %v1458
    %v1480 = vpop.f32.mrf.mxu0
    %v1481 = vadd.f32 0.0, %v1480
    %1482 = vmatmul.f32.gmra.mxu0 %v1461
    %v1483 = vpop.f32.mrf.mxu0
    %v1484 = vadd.f32 0.0, %v1483
    %1485 = vdwg.mxu0
    %v1486 = vmax.f32 %v1400, 0.0
    %v1487 = vmax.f32 %v1401, 0.0
    %v1488 = vmax.f32 %v1481, 0.0
    %v1489 = vmax.f32 %v1484, 0.0
    %v1491 = vrot.slane %v1486, 2
    %v1493 = vmax.f32 %v1486, %v1491
    %v1495 = vrot.slane %v1488, 2
    %v1497 = vmax.f32 %v1488, %v1495
    %v1498 = vrot.slane %v1486, 4
    %v1500 = vmax.f32 %v1493, %v1498
    %v1501 = vrot.slane %v1488, 4
    %v1503 = vmax.f32 %v1497, %v1501
    %v1504 = vrot.slane %v1486, 6
    %v1506 = vmax.f32 %v1500, %v1504
    %v1507 = vrot.slane %v1488, 6
    %v1509 = vmax.f32 %v1503, %v1507
    %v1510 = vmax.f32 %v1506, %v1487
    %v1511 = vmax.f32 %v1509, %v1489
    %v1513 = vrot.slane %v1487, 2
    %v1515 = vmax.f32 %v1510, %v1513
    %v1517 = vrot.slane %v1489, 2
    %v1519 = vmax.f32 %v1511, %v1517
    %v1520 = vrot.slane %v1487, 4
    %v1522 = vmax.f32 %v1515, %v1520
    %v1523 = vrot.slane %v1489, 4
    %v1525 = vmax.f32 %v1519, %v1523
    %v1526 = vrot.slane %v1487, 6
    %v1528 = vmax.f32 %v1522, %v1526
    %v1529 = vrot.slane %v1489, 6
    %v1531 = vmax.f32 %v1525, %v1529
    %v1532 = vld [vmem:[#allocation14] sm:$0xff]
    %v1533 = vld [vmem:[#allocation14 + $0x8] sm:$0xff]
    %v1534 = vld [vmem:[#allocation14 + $0x10] sm:$0xff]
    %v1535 = vld [vmem:[#allocation14 + $0x18] sm:$0xff]
    %v1536 = vld [vmem:[#allocation14 + $0x20] sm:$0xff]
    %v1537 = vld [vmem:[#allocation14 + $0x28] sm:$0xff]
    %v1538 = vld [vmem:[#allocation14 + $0x30] sm:$0xff]
    %v1539 = vld [vmem:[#allocation14 + $0x38] sm:$0xff]
    %v1540 = vld [vmem:[#allocation14 + $0x40] sm:$0xff]
    %v1541 = vld [vmem:[#allocation14 + $0x48] sm:$0xff]
    %v1542 = vld [vmem:[#allocation14 + $0x50] sm:$0xff]
    %v1543 = vld [vmem:[#allocation14 + $0x58] sm:$0xff]
    %v1545 = vsel %vm158, %v1531, 0
    %1547 = vmatpush.msra.mxu0 0.0
    %1548 = vmatpush.msra.mxu0 0.0
    %1549 = vmatpush.msra.mxu0 0.0
    %1550 = vmatpush.msra.mxu0 0.0
    %1551 = vmatpush.msra.mxu0 0.0
    %1552 = vmatpush.msra.mxu0 0.0
    %1553 = vmatpush.msra.mxu0 0.0
    %1554 = vmatpush.msra.mxu0 0.0
    %1555 = vmatpush.msra.mxu0 0.0
    %1556 = vmatpush.msra.mxu0 0.0
    %1557 = vmatpush.msra.mxu0 0.0
    %1558 = vmatpush.msra.mxu0 0.0
    %1559 = vmatpush.msra.mxu0 %v1543
    %1560 = vmatpush.msra.mxu0 %v1542
    %1561 = vmatpush.msra.mxu0 %v1541
    %1562 = vmatpush.msra.mxu0 %v1540
    %1563 = vmatmul.f32.gmra.mxu0 %v1545
    %v1564 = vpop.f32.mrf.mxu0
    %v1565 = vadd.f32 0.0, %v1564
    %1566 = vdwg.mxu0
    %v1568 = vsel %vm1404, %v1528, 0
    %1570 = vmatpush.msra.mxu0 0.0
    %1571 = vmatpush.msra.mxu0 0.0
    %1572 = vmatpush.msra.mxu0 0.0
    %1573 = vmatpush.msra.mxu0 0.0
    %1574 = vmatpush.msra.mxu0 0.0
    %1575 = vmatpush.msra.mxu0 0.0
    %1576 = vmatpush.msra.mxu0 0.0
    %1577 = vmatpush.msra.mxu0 0.0
    %1578 = vmatpush.msra.mxu0 %v1539
    %1579 = vmatpush.msra.mxu0 %v1538
    %1580 = vmatpush.msra.mxu0 %v1537
    %1581 = vmatpush.msra.mxu0 %v1536
    %1582 = vmatpush.msra.mxu0 %v1535
    %1583 = vmatpush.msra.mxu0 %v1534
    %1584 = vmatpush.msra.mxu0 %v1533
    %1585 = vmatpush.msra.mxu0 %v1532
    %1586 = vmatmul.f32.gmra.mxu0 %v1568
    %v1587 = vpop.f32.mrf.mxu0
    %v1588 = vadd.f32 %v1565, %v1587
    %1589 = vdwg.mxu0
    %v1590 = vld [vmem:[%s10] sm:$0x1]
    %v1592 = vperm.slane %v1590, 0
    %v1594 = vadd.f32 %v1588, %v1592
    %1595 = vst [vmem:[#allocation15] sm:$0x3] %v1594
    // Predicated region
    $region74: #{tpu_custom_call.1} parent=1 // pred_check
      _
    $region75: #{tpu_custom_call.1} parent=1 // pred_check_branch
      %1597 = sbr.rel (0) target = $region77
    $region76: #{tpu_custom_call.1} parent=1 // pred_region
      %1599 = vsyncadd [#allocation5], 0
      %s1601 = sshll.u32 [#allocation15], 4
      %s1602 = int_to_ptr.vmem [resolvable:$true] %s1601
      %s1603 = sshll.u32 %s11, 4
      %s1604 = int_to_ptr.hbm [resolvable:$true] %s1603
      %1606 = dma.vmem_to_hbm [thread:$0]  %s1602, 32, %s1604, [#allocation5]
    $region77: #{tpu_custom_call.1} parent=1 // pred_fallthru
      _
    // Predicated region
    $region78: #{tpu_custom_call.1} parent=1 // pred_check
      _
    $region79: #{tpu_custom_call.1} parent=1 // pred_check_branch
      %1608 = sbr.rel (0) target = $region81
    $region80: #{tpu_custom_call.1} parent=1 // pred_region
      %1610 = dma.done [#allocation5], 32
    $region81: #{tpu_custom_call.1} parent=1 // pred_fallthru
      _
    %1611 = vsyncpa [#allocation4], 1
    %1612 = vsyncpa [#allocation7], 1
    %1613 = vsyncpa [#allocation10], 1
    %1614 = vsyncpa [#allocation13], 1
    %1615 = vsyncpa [#allocation5], 1

</llo_original>
